<compile_context>
chip_gen: v5e
topology: v5e:2x2
jax: 0.10.0
libtpu: 0.0.40
codegen_flags: <defaults>
</compile_context>

<pallas_src>
import jax
import jax.numpy as jnp
from jax import lax
from jax.experimental import pallas as pl
from jax.experimental.pallas import tpu as pltpu

# --- small ViT hyperparameters (consistent with the module's forward) ---
BATCH         = 2
IN_CH         = 3
IMG           = 16
PATCH         = 4
NUM_PATCH     = (IMG // PATCH) ** 2        # 16 patches
SEQ           = NUM_PATCH + 1              # 17 tokens (cls + patches)
DIM           = 64                         # embed dim
NUM_HEADS     = 4
HEAD_DIM      = DIM // NUM_HEADS
MLP_HID       = 4 * DIM
NUM_CLASS     = 10
NUM_CLASS_PAD = 128                        # lane-dense padded head output
NUM_BLOCKS    = 8
LN_EPS        = 1e-6
SCALE         = HEAD_DIM ** -0.5
PATCH_DIM     = IN_CH * PATCH * PATCH      # 48
TOKENS        = BATCH * SEQ                # 34: batch folded into token axis
CLS_ROW       = BATCH * NUM_PATCH          # 32: cls tokens live in rows 32, 33
NEG_INF       = -1e30


def _layer_norm(h, gamma, beta):
    mu = jnp.mean(h, axis=-1, keepdims=True)
    var = jnp.mean(jnp.square(h - mu), axis=-1, keepdims=True)
    return (h - mu) * lax.rsqrt(var + LN_EPS) * gamma + beta


# ---------------- fully fused ViT forward kernel ----------------
def _vit_fused_kernel(
    patches_ref,          # (B*NUM_PATCH, PATCH_DIM)
    w_pe_ref, b_pe_ref,   # (PATCH_DIM, DIM), (1, DIM)
    pos_pat_ref,          # (B*NUM_PATCH, DIM)  pos embed for patch rows (tiled over batch)
    cls_pos_ref,          # (B, DIM)            cls_token + pos_embed[0], one row per batch
    bias_ref,             # (TOKENS, TOKENS)    block-diagonal additive attention mask
    g1_ref, b1_ref,       # (NB, 1, DIM)
    wqkv_ref, bqkv_ref,   # (NB, DIM, 3*DIM), (NB, 1, 3*DIM)   (Q part pre-scaled)
    wp_ref, bp_ref,       # (NB, DIM, DIM), (NB, 1, DIM)
    g2_ref, b2_ref,       # (NB, 1, DIM)
    w1_ref, bm1_ref,      # (NB, DIM, MLP_HID), (NB, 1, MLP_HID)
    w2_ref, bm2_ref,      # (NB, MLP_HID, DIM), (NB, 1, DIM)
    gf_ref, bf_ref,       # (1, DIM)
    wh_ref, bh_ref,       # (DIM, NUM_CLASS_PAD), (1, NUM_CLASS_PAD)
    o_ref,                # (B, NUM_CLASS_PAD)
):
    # --- patch embedding (Conv2d k=s=PATCH as one matmul) + positional embed ---
    tok = (jnp.dot(patches_ref[...], w_pe_ref[...],
                   preferred_element_type=jnp.float32)
           + b_pe_ref[...] + pos_pat_ref[...])                     # (32, DIM)
    # token layout: rows [0, CLS_ROW) = patch tokens (batch-major),
    #               rows [CLS_ROW, TOKENS) = cls tokens (one per batch element)
    x = jnp.concatenate([tok, cls_pos_ref[...]], axis=0)           # (TOKENS, DIM)
    bias = bias_ref[...]                                           # (TOKENS, TOKENS)

    def block(i, x):
        # --- multi-head self-attention (pre-LN) ---
        h = _layer_norm(x, g1_ref[i], b1_ref[i])
        qkv = jnp.dot(h, wqkv_ref[i],
                      preferred_element_type=jnp.float32) + bqkv_ref[i]   # (TOKENS, 3*DIM)
        head_outs = []
        for hh in range(NUM_HEADS):
            qh = qkv[:, hh * HEAD_DIM:(hh + 1) * HEAD_DIM]
            kh = qkv[:, DIM + hh * HEAD_DIM: DIM + (hh + 1) * HEAD_DIM]
            vh = qkv[:, 2 * DIM + hh * HEAD_DIM: 2 * DIM + (hh + 1) * HEAD_DIM]
            # scale already folded into wqkv/bqkv; block-diagonal bias keeps
            # batches independent while sharing one (TOKENS, TOKENS) matmul.
            s = jnp.dot(qh, kh.T, preferred_element_type=jnp.float32) + bias
            s = s - jnp.max(s, axis=-1, keepdims=True)
            p = jnp.exp(s)
            p = p * pl.reciprocal(jnp.sum(p, axis=-1, keepdims=True), approx=True)
            head_outs.append(jnp.dot(p, vh, preferred_element_type=jnp.float32))
        ao = jnp.concatenate(head_outs, axis=-1)                   # (TOKENS, DIM)
        x = x + jnp.dot(ao, wp_ref[i],
                        preferred_element_type=jnp.float32) + bp_ref[i]

        # --- MLP (pre-LN) ---
        h2 = _layer_norm(x, g2_ref[i], b2_ref[i])
        m = jnp.dot(h2, w1_ref[i],
                    preferred_element_type=jnp.float32) + bm1_ref[i]
        # TODO(synk): timm ViT uses exact (erf) GELU; tanh-approx GELU used here
        # for Mosaic-safe lowering.
        m = jax.nn.gelu(m, approximate=True)
        m = jnp.dot(m, w2_ref[i],
                    preferred_element_type=jnp.float32) + bm2_ref[i]
        return x + m

    x = lax.fori_loop(0, NUM_BLOCKS, block, x)

    # final norm + head on the cls rows only (norm/head are per-token, so this
    # is equivalent to norm(head(y))[:, 0, :] in the reference module).
    cls = x[CLS_ROW:CLS_ROW + BATCH, :]                            # (B, DIM), aligned slice
    hc = _layer_norm(cls, gf_ref[...], bf_ref[...])
    o_ref[...] = (jnp.dot(hc, wh_ref[...], preferred_element_type=jnp.float32)
                  + bh_ref[...])


def _full_spec(shape):
    nd = len(shape)
    return pl.BlockSpec(shape, lambda i, nd=nd: (0,) * nd)


@jax.jit
def vit_small_forward(x, kparams):
    B = x.shape[0]
    # im2col patch extraction == Conv2d(kernel=stride=PATCH), NCHW input
    xp = x.reshape(B, IN_CH, IMG // PATCH, PATCH, IMG // PATCH, PATCH)
    xp = xp.transpose(0, 2, 4, 1, 3, 5).reshape(B * NUM_PATCH, PATCH_DIM)

    args = (xp,) + kparams
    out = pl.pallas_call(
        _vit_fused_kernel,
        out_shape=jax.ShapeDtypeStruct((B, NUM_CLASS_PAD), jnp.float32),
        grid=(1,),
        in_specs=[_full_spec(a.shape) for a in args],
        out_specs=_full_spec((B, NUM_CLASS_PAD)),
        compiler_params=pltpu.CompilerParams(dimension_semantics=("arbitrary",)),
    )(*args)
    return out[:, :NUM_CLASS]


# ---------------- deterministic parameter init (logical / PyTorch-like) ----------------
def init_params(key):
    keys = jax.random.split(key, 64)
    ki = iter(keys)

    def nrm(shape):
        return (0.02 * jax.random.normal(next(ki), shape)).astype(jnp.float32)

    params = {
        "w_pe": nrm((PATCH_DIM, DIM)),                 # conv weight flattened to [C*P*P, D]
        "b_pe": jnp.zeros((1, DIM), jnp.float32),
        "cls_token": nrm((1, 1, DIM)),
        "pos_embed": nrm((1, SEQ, DIM)),
        "ln_g": jnp.ones((1, DIM), jnp.float32),
        "ln_b": jnp.zeros((1, DIM), jnp.float32),
        "w_head": nrm((DIM, NUM_CLASS)),
        "b_head": jnp.zeros((1, NUM_CLASS), jnp.float32),
    }
    blocks = []
    for _ in range(NUM_BLOCKS):
        blocks.append((
            jnp.ones((1, DIM), jnp.float32),            # ln1 gamma
            jnp.zeros((1, DIM), jnp.float32),           # ln1 beta
            nrm((DIM, 3 * DIM)),                        # qkv weight
            jnp.zeros((1, 3 * DIM), jnp.float32),       # qkv bias
            nrm((DIM, DIM)),                            # attn proj weight
            jnp.zeros((1, DIM), jnp.float32),           # attn proj bias
            jnp.ones((1, DIM), jnp.float32),            # ln2 gamma
            jnp.zeros((1, DIM), jnp.float32),           # ln2 beta
            nrm((DIM, MLP_HID)),                        # mlp fc1 weight
            jnp.zeros((1, MLP_HID), jnp.float32),       # mlp fc1 bias
            nrm((MLP_HID, DIM)),                        # mlp fc2 weight
            jnp.zeros((1, DIM), jnp.float32),           # mlp fc2 bias
        ))
    params["blocks"] = blocks
    return params


# ---------------- one-time repack of params for the fused kernel ----------------
def prepare_params(params, batch):
    """Stack per-block params along a leading NUM_BLOCKS axis, fold the
    softmax scale into the Q projection, tile positional / cls rows for the
    batch-folded token layout, build the block-diagonal attention bias, and
    pad the head to a lane-dense 128-wide output."""
    blocks = params["blocks"]

    def stack(j):
        return jnp.stack([blk[j] for blk in blocks], axis=0)

    g1, b1 = stack(0), stack(1)
    wqkv, bqkv = stack(2), stack(3)
    # fold SCALE = HEAD_DIM**-0.5 into the Q columns of the QKV projection
    wqkv = wqkv.at[:, :, :DIM].multiply(SCALE)
    bqkv = bqkv.at[:, :, :DIM].multiply(SCALE)
    wp, bp = stack(4), stack(5)
    g2, b2 = stack(6), stack(7)
    w1, bm1 = stack(8), stack(9)
    w2, bm2 = stack(10), stack(11)

    # positional embedding for the patch rows (batch-major tiling)
    pos_pat = jnp.tile(params["pos_embed"][0, 1:, :], (batch, 1))          # (B*NP, DIM)
    # one cls row per batch element, with its positional embedding folded in
    cls_pos = jnp.broadcast_to(
        params["cls_token"][0] + params["pos_embed"][0, :1, :], (batch, DIM))

    # block-diagonal additive mask: tokens only attend within their own batch
    bid = jnp.concatenate(
        [jnp.repeat(jnp.arange(batch), NUM_PATCH), jnp.arange(batch)])     # (TOKENS,)
    bias = jnp.where(bid[:, None] == bid[None, :], 0.0, NEG_INF).astype(jnp.float32)

    # pad classification head to 128 output lanes (wrapper slices back to 10)
    w_head = jnp.zeros((DIM, NUM_CLASS_PAD), jnp.float32).at[:, :NUM_CLASS].set(
        params["w_head"])
    b_head = jnp.zeros((1, NUM_CLASS_PAD), jnp.float32).at[:, :NUM_CLASS].set(
        params["b_head"])

    return (params["w_pe"], params["b_pe"], pos_pat, cls_pos, bias,
            g1, b1, wqkv, bqkv, wp, bp, g2, b2, w1, bm1, w2, bm2,
            params["ln_g"], params["ln_b"], w_head, b_head)


if __name__ == "__main__":
    key = jax.random.PRNGKey(0)
    kx, kp_key = jax.random.split(key)
    x = jax.random.normal(kx, (BATCH, IN_CH, IMG, IMG), dtype=jnp.float32)
    params = init_params(kp_key)
    kparams = prepare_params(params, BATCH)

    out = vit_small_forward(x, kparams)
    out = jax.block_until_ready(out)
    assert out.shape == (BATCH, NUM_CLASS)
    assert bool(jnp.all(jnp.isfinite(out)))
    print("KERNEL_OK")
</pallas_src>

<mosaic_0001>
module attributes {stable_mosaic.version = 11 : i64} {
  func.func @_vit_fused_kernel(%arg0: i32, %arg1: memref<32x48xf32, #tpu.memory_space<vmem>>, %arg2: memref<48x64xf32, #tpu.memory_space<vmem>>, %arg3: memref<1x64xf32, #tpu.memory_space<vmem>>, %arg4: memref<32x64xf32, #tpu.memory_space<vmem>>, %arg5: memref<2x64xf32, #tpu.memory_space<vmem>>, %arg6: memref<34x34xf32, #tpu.memory_space<vmem>>, %arg7: memref<8x1x64xf32, #tpu.memory_space<vmem>>, %arg8: memref<8x1x64xf32, #tpu.memory_space<vmem>>, %arg9: memref<8x64x192xf32, #tpu.memory_space<vmem>>, %arg10: memref<8x1x192xf32, #tpu.memory_space<vmem>>, %arg11: memref<8x64x64xf32, #tpu.memory_space<vmem>>, %arg12: memref<8x1x64xf32, #tpu.memory_space<vmem>>, %arg13: memref<8x1x64xf32, #tpu.memory_space<vmem>>, %arg14: memref<8x1x64xf32, #tpu.memory_space<vmem>>, %arg15: memref<8x64x256xf32, #tpu.memory_space<vmem>>, %arg16: memref<8x1x256xf32, #tpu.memory_space<vmem>>, %arg17: memref<8x256x64xf32, #tpu.memory_space<vmem>>, %arg18: memref<8x1x64xf32, #tpu.memory_space<vmem>>, %arg19: memref<1x64xf32, #tpu.memory_space<vmem>>, %arg20: memref<1x64xf32, #tpu.memory_space<vmem>>, %arg21: memref<64x128xf32, #tpu.memory_space<vmem>>, %arg22: memref<1x128xf32, #tpu.memory_space<vmem>>, %arg23: memref<2x128xf32, #tpu.memory_space<vmem>>) attributes {dimension_semantics = [#tpu.dimension_semantics<arbitrary>], iteration_bounds = array<i64: 1>, scalar_prefetch = 0 : i64, scratch_operands = 0 : i64, tpu.core_type = #tpu.core_type<tc>, window_params = [{pipeline_mode = #tpu.pipeline_mode<synchronous>, transform_indices = @transform_0, window_bounds = array<i64: 32, 48>}, {pipeline_mode = #tpu.pipeline_mode<synchronous>, transform_indices = @transform_1, window_bounds = array<i64: 48, 64>}, {pipeline_mode = #tpu.pipeline_mode<synchronous>, transform_indices = @transform_2, window_bounds = array<i64: 1, 64>}, {pipeline_mode = #tpu.pipeline_mode<synchronous>, transform_indices = @transform_3, window_bounds = array<i64: 32, 64>}, {pipeline_mode = #tpu.pipeline_mode<synchronous>, transform_indices = @transform_4, window_bounds = array<i64: 2, 64>}, {pipeline_mode = #tpu.pipeline_mode<synchronous>, transform_indices = @transform_5, window_bounds = array<i64: 34, 34>}, {pipeline_mode = #tpu.pipeline_mode<synchronous>, transform_indices = @transform_6, window_bounds = array<i64: 8, 1, 64>}, {pipeline_mode = #tpu.pipeline_mode<synchronous>, transform_indices = @transform_7, window_bounds = array<i64: 8, 1, 64>}, {pipeline_mode = #tpu.pipeline_mode<synchronous>, transform_indices = @transform_8, window_bounds = array<i64: 8, 64, 192>}, {pipeline_mode = #tpu.pipeline_mode<synchronous>, transform_indices = @transform_9, window_bounds = array<i64: 8, 1, 192>}, {pipeline_mode = #tpu.pipeline_mode<synchronous>, transform_indices = @transform_10, window_bounds = array<i64: 8, 64, 64>}, {pipeline_mode = #tpu.pipeline_mode<synchronous>, transform_indices = @transform_11, window_bounds = array<i64: 8, 1, 64>}, {pipeline_mode = #tpu.pipeline_mode<synchronous>, transform_indices = @transform_12, window_bounds = array<i64: 8, 1, 64>}, {pipeline_mode = #tpu.pipeline_mode<synchronous>, transform_indices = @transform_13, window_bounds = array<i64: 8, 1, 64>}, {pipeline_mode = #tpu.pipeline_mode<synchronous>, transform_indices = @transform_14, window_bounds = array<i64: 8, 64, 256>}, {pipeline_mode = #tpu.pipeline_mode<synchronous>, transform_indices = @transform_15, window_bounds = array<i64: 8, 1, 256>}, {pipeline_mode = #tpu.pipeline_mode<synchronous>, transform_indices = @transform_16, window_bounds = array<i64: 8, 256, 64>}, {pipeline_mode = #tpu.pipeline_mode<synchronous>, transform_indices = @transform_17, window_bounds = array<i64: 8, 1, 64>}, {pipeline_mode = #tpu.pipeline_mode<synchronous>, transform_indices = @transform_18, window_bounds = array<i64: 1, 64>}, {pipeline_mode = #tpu.pipeline_mode<synchronous>, transform_indices = @transform_19, window_bounds = array<i64: 1, 64>}, {pipeline_mode = #tpu.pipeline_mode<synchronous>, transform_indices = @transform_20, window_bounds = array<i64: 64, 128>}, {pipeline_mode = #tpu.pipeline_mode<synchronous>, transform_indices = @transform_21, window_bounds = array<i64: 1, 128>}, {pipeline_mode = #tpu.pipeline_mode<synchronous>, transform_indices = @transform_22, window_bounds = array<i64: 2, 128>}]} {
    %c0 = arith.constant 0 : index
    %c0_0 = arith.constant 0 : index
    %0 = vector.load %arg1[%c0, %c0_0] : memref<32x48xf32, #tpu.memory_space<vmem>>, vector<32x48xf32>
    %c0_1 = arith.constant 0 : index
    %c0_2 = arith.constant 0 : index
    %1 = vector.load %arg2[%c0_1, %c0_2] : memref<48x64xf32, #tpu.memory_space<vmem>>, vector<48x64xf32>
    %cst = arith.constant dense<0.000000e+00> : vector<32x64xf32>
    %2 = tpu.matmul %0, %1, %cst {dimension_numbers = #tpu.dot_dimension_numbers<[1], [0], [0], [1], [0, 0, 1, 1], [], []>} : vector<32x48xf32>, vector<48x64xf32>, vector<32x64xf32> -> vector<32x64xf32>
    %c0_3 = arith.constant 0 : index
    %c0_4 = arith.constant 0 : index
    %3 = vector.load %arg3[%c0_3, %c0_4] : memref<1x64xf32, #tpu.memory_space<vmem>>, vector<1x64xf32>
    %4 = vector.broadcast %3 : vector<1x64xf32> to vector<32x64xf32>
    %5 = arith.addf %2, %4 : vector<32x64xf32>
    %c0_5 = arith.constant 0 : index
    %c0_6 = arith.constant 0 : index
    %6 = vector.load %arg4[%c0_5, %c0_6] : memref<32x64xf32, #tpu.memory_space<vmem>>, vector<32x64xf32>
    %7 = arith.addf %5, %6 : vector<32x64xf32>
    %c0_7 = arith.constant 0 : index
    %c0_8 = arith.constant 0 : index
    %8 = vector.load %arg5[%c0_7, %c0_8] : memref<2x64xf32, #tpu.memory_space<vmem>>, vector<2x64xf32>
    %9 = tpu.concatenate %7, %8 in 0 : vector<32x64xf32>, vector<2x64xf32> -> vector<34x64xf32>
    %c0_9 = arith.constant 0 : index
    %c0_10 = arith.constant 0 : index
    %10 = vector.load %arg6[%c0_9, %c0_10] : memref<34x34xf32, #tpu.memory_space<vmem>>, vector<34x34xf32>
    %c0_i32 = arith.constant 0 : i32
    %c8_i32 = arith.constant 8 : i32
    %11 = arith.addi %c0_i32, %c8_i32 : i32
    %c1_i32 = arith.constant 1 : i32
    %12 = scf.for %arg24 = %c0_i32 to %11 step %c1_i32 iter_args(%arg25 = %9) -> (vector<34x64xf32>)  : i32 {
      %44 = arith.index_cast %arg24 : i32 to index
      %c0_28 = arith.constant 0 : index
      %c0_29 = arith.constant 0 : index
      %45 = vector.load %arg7[%44, %c0_28, %c0_29] : memref<8x1x64xf32, #tpu.memory_space<vmem>>, vector<1x1x64xf32>
      %46 = vector.shape_cast %45 : vector<1x1x64xf32> to vector<1x64xf32>
      %47 = arith.index_cast %arg24 : i32 to index
      %c0_30 = arith.constant 0 : index
      %c0_31 = arith.constant 0 : index
      %48 = vector.load %arg8[%47, %c0_30, %c0_31] : memref<8x1x64xf32, #tpu.memory_space<vmem>>, vector<1x1x64xf32>
      %49 = vector.shape_cast %48 : vector<1x1x64xf32> to vector<1x64xf32>
      %cst_32 = arith.constant dense<0.000000e+00> : vector<34xf32>
      %50 = vector.multi_reduction <add>, %arg25, %cst_32 [1] : vector<34x64xf32> to vector<34xf32>
      %51 = vector.shape_cast %50 : vector<34xf32> to vector<34x1xf32>
      %cst_33 = arith.constant 6.400000e+01 : f32
      %52 = vector.broadcast %cst_33 : f32 to vector<34x1xf32>
      %53 = arith.divf %51, %52 : vector<34x1xf32>
      %54 = vector.broadcast %53 : vector<34x1xf32> to vector<34x64xf32>
      %55 = arith.subf %arg25, %54 : vector<34x64xf32>
      %56 = arith.mulf %55, %55 : vector<34x64xf32>
      %cst_34 = arith.constant dense<0.000000e+00> : vector<34xf32>
      %57 = vector.multi_reduction <add>, %56, %cst_34 [1] : vector<34x64xf32> to vector<34xf32>
      %58 = vector.shape_cast %57 : vector<34xf32> to vector<34x1xf32>
      %cst_35 = arith.constant 6.400000e+01 : f32
      %59 = vector.broadcast %cst_35 : f32 to vector<34x1xf32>
      %60 = arith.divf %58, %59 : vector<34x1xf32>
      %61 = vector.broadcast %53 : vector<34x1xf32> to vector<34x64xf32>
      %62 = arith.subf %arg25, %61 : vector<34x64xf32>
      %cst_36 = arith.constant 9.99999997E-7 : f32
      %63 = vector.broadcast %cst_36 : f32 to vector<34x1xf32>
      %64 = arith.addf %60, %63 : vector<34x1xf32>
      %65 = math.rsqrt %64 : vector<34x1xf32>
      %66 = vector.broadcast %65 : vector<34x1xf32> to vector<34x64xf32>
      %67 = arith.mulf %62, %66 : vector<34x64xf32>
      %68 = vector.broadcast %46 : vector<1x64xf32> to vector<34x64xf32>
      %69 = arith.mulf %67, %68 : vector<34x64xf32>
      %70 = vector.broadcast %49 : vector<1x64xf32> to vector<34x64xf32>
      %71 = arith.addf %69, %70 : vector<34x64xf32>
      %72 = arith.index_cast %arg24 : i32 to index
      %c0_37 = arith.constant 0 : index
      %c0_38 = arith.constant 0 : index
      %73 = vector.load %arg9[%72, %c0_37, %c0_38] : memref<8x64x192xf32, #tpu.memory_space<vmem>>, vector<1x64x192xf32>
      %74 = vector.shape_cast %73 : vector<1x64x192xf32> to vector<64x192xf32>
      %cst_39 = arith.constant dense<0.000000e+00> : vector<34x192xf32>
      %75 = tpu.matmul %71, %74, %cst_39 {dimension_numbers = #tpu.dot_dimension_numbers<[1], [0], [0], [1], [0, 0, 1, 1], [], []>} : vector<34x64xf32>, vector<64x192xf32>, vector<34x192xf32> -> vector<34x192xf32>
      %76 = arith.index_cast %arg24 : i32 to index
      %c0_40 = arith.constant 0 : index
      %c0_41 = arith.constant 0 : index
      %77 = vector.load %arg10[%76, %c0_40, %c0_41] : memref<8x1x192xf32, #tpu.memory_space<vmem>>, vector<1x1x192xf32>
      %78 = vector.shape_cast %77 : vector<1x1x192xf32> to vector<1x192xf32>
      %79 = vector.broadcast %78 : vector<1x192xf32> to vector<34x192xf32>
      %80 = arith.addf %75, %79 : vector<34x192xf32>
      %81 = vector.extract_strided_slice %80 {offsets = [0, 0], sizes = [34, 16], strides = [1, 1]} : vector<34x192xf32> to vector<34x16xf32>
      %82 = vector.extract_strided_slice %80 {offsets = [0, 64], sizes = [34, 16], strides = [1, 1]} : vector<34x192xf32> to vector<34x16xf32>
      %83 = vector.extract_strided_slice %80 {offsets = [0, 128], sizes = [34, 16], strides = [1, 1]} : vector<34x192xf32> to vector<34x16xf32>
      %84 = tpu.transpose %82, [1, 0] : vector<34x16xf32> -> vector<16x34xf32>
      %cst_42 = arith.constant dense<0.000000e+00> : vector<34x34xf32>
      %85 = tpu.matmul %81, %84, %cst_42 {dimension_numbers = #tpu.dot_dimension_numbers<[1], [0], [0], [1], [0, 0, 1, 1], [], []>} : vector<34x16xf32>, vector<16x34xf32>, vector<34x34xf32> -> vector<34x34xf32>
      %86 = arith.addf %85, %10 : vector<34x34xf32>
      %cst_43 = arith.constant dense<0xFF800000> : vector<34xf32>
      %87 = vector.multi_reduction <maximumf>, %86, %cst_43 [1] : vector<34x34xf32> to vector<34xf32>
      %88 = vector.shape_cast %87 : vector<34xf32> to vector<34x1xf32>
      %89 = vector.broadcast %88 : vector<34x1xf32> to vector<34x34xf32>
      %90 = arith.subf %86, %89 : vector<34x34xf32>
      %91 = math.exp %90 : vector<34x34xf32>
      %cst_44 = arith.constant dense<0.000000e+00> : vector<34xf32>
      %92 = vector.multi_reduction <add>, %91, %cst_44 [1] : vector<34x34xf32> to vector<34xf32>
      %93 = vector.shape_cast %92 : vector<34xf32> to vector<34x1xf32>
      %94 = tpu.reciprocal %93 {approx = true} : vector<34x1xf32> -> vector<34x1xf32>
      %95 = vector.broadcast %94 : vector<34x1xf32> to vector<34x34xf32>
      %96 = arith.mulf %91, %95 : vector<34x34xf32>
      %cst_45 = arith.constant dense<0.000000e+00> : vector<34x16xf32>
      %97 = tpu.matmul %96, %83, %cst_45 {dimension_numbers = #tpu.dot_dimension_numbers<[1], [0], [0], [1], [0, 0, 1, 1], [], []>} : vector<34x34xf32>, vector<34x16xf32>, vector<34x16xf32> -> vector<34x16xf32>
      %98 = vector.extract_strided_slice %80 {offsets = [0, 16], sizes = [34, 16], strides = [1, 1]} : vector<34x192xf32> to vector<34x16xf32>
      %99 = vector.extract_strided_slice %80 {offsets = [0, 80], sizes = [34, 16], strides = [1, 1]} : vector<34x192xf32> to vector<34x16xf32>
      %100 = vector.extract_strided_slice %80 {offsets = [0, 144], sizes = [34, 16], strides = [1, 1]} : vector<34x192xf32> to vector<34x16xf32>
      %101 = tpu.transpose %99, [1, 0] : vector<34x16xf32> -> vector<16x34xf32>
      %cst_46 = arith.constant dense<0.000000e+00> : vector<34x34xf32>
      %102 = tpu.matmul %98, %101, %cst_46 {dimension_numbers = #tpu.dot_dimension_numbers<[1], [0], [0], [1], [0, 0, 1, 1], [], []>} : vector<34x16xf32>, vector<16x34xf32>, vector<34x34xf32> -> vector<34x34xf32>
      %103 = arith.addf %102, %10 : vector<34x34xf32>
      %cst_47 = arith.constant dense<0xFF800000> : vector<34xf32>
      %104 = vector.multi_reduction <maximumf>, %103, %cst_47 [1] : vector<34x34xf32> to vector<34xf32>
      %105 = vector.shape_cast %104 : vector<34xf32> to vector<34x1xf32>
      %106 = vector.broadcast %105 : vector<34x1xf32> to vector<34x34xf32>
      %107 = arith.subf %103, %106 : vector<34x34xf32>
      %108 = math.exp %107 : vector<34x34xf32>
      %cst_48 = arith.constant dense<0.000000e+00> : vector<34xf32>
      %109 = vector.multi_reduction <add>, %108, %cst_48 [1] : vector<34x34xf32> to vector<34xf32>
      %110 = vector.shape_cast %109 : vector<34xf32> to vector<34x1xf32>
      %111 = tpu.reciprocal %110 {approx = true} : vector<34x1xf32> -> vector<34x1xf32>
      %112 = vector.broadcast %111 : vector<34x1xf32> to vector<34x34xf32>
      %113 = arith.mulf %108, %112 : vector<34x34xf32>
      %cst_49 = arith.constant dense<0.000000e+00> : vector<34x16xf32>
      %114 = tpu.matmul %113, %100, %cst_49 {dimension_numbers = #tpu.dot_dimension_numbers<[1], [0], [0], [1], [0, 0, 1, 1], [], []>} : vector<34x34xf32>, vector<34x16xf32>, vector<34x16xf32> -> vector<34x16xf32>
      %115 = vector.extract_strided_slice %80 {offsets = [0, 32], sizes = [34, 16], strides = [1, 1]} : vector<34x192xf32> to vector<34x16xf32>
      %116 = vector.extract_strided_slice %80 {offsets = [0, 96], sizes = [34, 16], strides = [1, 1]} : vector<34x192xf32> to vector<34x16xf32>
      %117 = vector.extract_strided_slice %80 {offsets = [0, 160], sizes = [34, 16], strides = [1, 1]} : vector<34x192xf32> to vector<34x16xf32>
      %118 = tpu.transpose %116, [1, 0] : vector<34x16xf32> -> vector<16x34xf32>
      %cst_50 = arith.constant dense<0.000000e+00> : vector<34x34xf32>
      %119 = tpu.matmul %115, %118, %cst_50 {dimension_numbers = #tpu.dot_dimension_numbers<[1], [0], [0], [1], [0, 0, 1, 1], [], []>} : vector<34x16xf32>, vector<16x34xf32>, vector<34x34xf32> -> vector<34x34xf32>
      %120 = arith.addf %119, %10 : vector<34x34xf32>
      %cst_51 = arith.constant dense<0xFF800000> : vector<34xf32>
      %121 = vector.multi_reduction <maximumf>, %120, %cst_51 [1] : vector<34x34xf32> to vector<34xf32>
      %122 = vector.shape_cast %121 : vector<34xf32> to vector<34x1xf32>
      %123 = vector.broadcast %122 : vector<34x1xf32> to vector<34x34xf32>
      %124 = arith.subf %120, %123 : vector<34x34xf32>
      %125 = math.exp %124 : vector<34x34xf32>
      %cst_52 = arith.constant dense<0.000000e+00> : vector<34xf32>
      %126 = vector.multi_reduction <add>, %125, %cst_52 [1] : vector<34x34xf32> to vector<34xf32>
      %127 = vector.shape_cast %126 : vector<34xf32> to vector<34x1xf32>
      %128 = tpu.reciprocal %127 {approx = true} : vector<34x1xf32> -> vector<34x1xf32>
      %129 = vector.broadcast %128 : vector<34x1xf32> to vector<34x34xf32>
      %130 = arith.mulf %125, %129 : vector<34x34xf32>
      %cst_53 = arith.constant dense<0.000000e+00> : vector<34x16xf32>
      %131 = tpu.matmul %130, %117, %cst_53 {dimension_numbers = #tpu.dot_dimension_numbers<[1], [0], [0], [1], [0, 0, 1, 1], [], []>} : vector<34x34xf32>, vector<34x16xf32>, vector<34x16xf32> -> vector<34x16xf32>
      %132 = vector.extract_strided_slice %80 {offsets = [0, 48], sizes = [34, 16], strides = [1, 1]} : vector<34x192xf32> to vector<34x16xf32>
      %133 = vector.extract_strided_slice %80 {offsets = [0, 112], sizes = [34, 16], strides = [1, 1]} : vector<34x192xf32> to vector<34x16xf32>
      %134 = vector.extract_strided_slice %80 {offsets = [0, 176], sizes = [34, 16], strides = [1, 1]} : vector<34x192xf32> to vector<34x16xf32>
      %135 = tpu.transpose %133, [1, 0] : vector<34x16xf32> -> vector<16x34xf32>
      %cst_54 = arith.constant dense<0.000000e+00> : vector<34x34xf32>
      %136 = tpu.matmul %132, %135, %cst_54 {dimension_numbers = #tpu.dot_dimension_numbers<[1], [0], [0], [1], [0, 0, 1, 1], [], []>} : vector<34x16xf32>, vector<16x34xf32>, vector<34x34xf32> -> vector<34x34xf32>
      %137 = arith.addf %136, %10 : vector<34x34xf32>
      %cst_55 = arith.constant dense<0xFF800000> : vector<34xf32>
      %138 = vector.multi_reduction <maximumf>, %137, %cst_55 [1] : vector<34x34xf32> to vector<34xf32>
      %139 = vector.shape_cast %138 : vector<34xf32> to vector<34x1xf32>
      %140 = vector.broadcast %139 : vector<34x1xf32> to vector<34x34xf32>
      %141 = arith.subf %137, %140 : vector<34x34xf32>
      %142 = math.exp %141 : vector<34x34xf32>
      %cst_56 = arith.constant dense<0.000000e+00> : vector<34xf32>
      %143 = vector.multi_reduction <add>, %142, %cst_56 [1] : vector<34x34xf32> to vector<34xf32>
      %144 = vector.shape_cast %143 : vector<34xf32> to vector<34x1xf32>
      %145 = tpu.reciprocal %144 {approx = true} : vector<34x1xf32> -> vector<34x1xf32>
      %146 = vector.broadcast %145 : vector<34x1xf32> to vector<34x34xf32>
      %147 = arith.mulf %142, %146 : vector<34x34xf32>
      %cst_57 = arith.constant dense<0.000000e+00> : vector<34x16xf32>
      %148 = tpu.matmul %147, %134, %cst_57 {dimension_numbers = #tpu.dot_dimension_numbers<[1], [0], [0], [1], [0, 0, 1, 1], [], []>} : vector<34x34xf32>, vector<34x16xf32>, vector<34x16xf32> -> vector<34x16xf32>
      %149 = tpu.concatenate %97, %114, %131, %148 in 1 : vector<34x16xf32>, vector<34x16xf32>, vector<34x16xf32>, vector<34x16xf32> -> vector<34x64xf32>
      %150 = arith.index_cast %arg24 : i32 to index
      %c0_58 = arith.constant 0 : index
      %c0_59 = arith.constant 0 : index
      %151 = vector.load %arg11[%150, %c0_58, %c0_59] : memref<8x64x64xf32, #tpu.memory_space<vmem>>, vector<1x64x64xf32>
      %152 = vector.shape_cast %151 : vector<1x64x64xf32> to vector<64x64xf32>
      %cst_60 = arith.constant dense<0.000000e+00> : vector<34x64xf32>
      %153 = tpu.matmul %149, %152, %cst_60 {dimension_numbers = #tpu.dot_dimension_numbers<[1], [0], [0], [1], [0, 0, 1, 1], [], []>} : vector<34x64xf32>, vector<64x64xf32>, vector<34x64xf32> -> vector<34x64xf32>
      %154 = arith.addf %arg25, %153 : vector<34x64xf32>
      %155 = arith.index_cast %arg24 : i32 to index
      %c0_61 = arith.constant 0 : index
      %c0_62 = arith.constant 0 : index
      %156 = vector.load %arg12[%155, %c0_61, %c0_62] : memref<8x1x64xf32, #tpu.memory_space<vmem>>, vector<1x1x64xf32>
      %157 = vector.shape_cast %156 : vector<1x1x64xf32> to vector<1x64xf32>
      %158 = vector.broadcast %157 : vector<1x64xf32> to vector<34x64xf32>
      %159 = arith.addf %154, %158 : vector<34x64xf32>
      %160 = arith.index_cast %arg24 : i32 to index
      %c0_63 = arith.constant 0 : index
      %c0_64 = arith.constant 0 : index
      %161 = vector.load %arg13[%160, %c0_63, %c0_64] : memref<8x1x64xf32, #tpu.memory_space<vmem>>, vector<1x1x64xf32>
      %162 = vector.shape_cast %161 : vector<1x1x64xf32> to vector<1x64xf32>
      %163 = arith.index_cast %arg24 : i32 to index
      %c0_65 = arith.constant 0 : index
      %c0_66 = arith.constant 0 : index
      %164 = vector.load %arg14[%163, %c0_65, %c0_66] : memref<8x1x64xf32, #tpu.memory_space<vmem>>, vector<1x1x64xf32>
      %165 = vector.shape_cast %164 : vector<1x1x64xf32> to vector<1x64xf32>
      %cst_67 = arith.constant dense<0.000000e+00> : vector<34xf32>
      %166 = vector.multi_reduction <add>, %159, %cst_67 [1] : vector<34x64xf32> to vector<34xf32>
      %167 = vector.shape_cast %166 : vector<34xf32> to vector<34x1xf32>
      %cst_68 = arith.constant 6.400000e+01 : f32
      %168 = vector.broadcast %cst_68 : f32 to vector<34x1xf32>
      %169 = arith.divf %167, %168 : vector<34x1xf32>
      %170 = vector.broadcast %169 : vector<34x1xf32> to vector<34x64xf32>
      %171 = arith.subf %159, %170 : vector<34x64xf32>
      %172 = arith.mulf %171, %171 : vector<34x64xf32>
      %cst_69 = arith.constant dense<0.000000e+00> : vector<34xf32>
      %173 = vector.multi_reduction <add>, %172, %cst_69 [1] : vector<34x64xf32> to vector<34xf32>
      %174 = vector.shape_cast %173 : vector<34xf32> to vector<34x1xf32>
      %cst_70 = arith.constant 6.400000e+01 : f32
      %175 = vector.broadcast %cst_70 : f32 to vector<34x1xf32>
      %176 = arith.divf %174, %175 : vector<34x1xf32>
      %177 = vector.broadcast %169 : vector<34x1xf32> to vector<34x64xf32>
      %178 = arith.subf %159, %177 : vector<34x64xf32>
      %cst_71 = arith.constant 9.99999997E-7 : f32
      %179 = vector.broadcast %cst_71 : f32 to vector<34x1xf32>
      %180 = arith.addf %176, %179 : vector<34x1xf32>
      %181 = math.rsqrt %180 : vector<34x1xf32>
      %182 = vector.broadcast %181 : vector<34x1xf32> to vector<34x64xf32>
      %183 = arith.mulf %178, %182 : vector<34x64xf32>
      %184 = vector.broadcast %162 : vector<1x64xf32> to vector<34x64xf32>
      %185 = arith.mulf %183, %184 : vector<34x64xf32>
      %186 = vector.broadcast %165 : vector<1x64xf32> to vector<34x64xf32>
      %187 = arith.addf %185, %186 : vector<34x64xf32>
      %188 = arith.index_cast %arg24 : i32 to index
      %c0_72 = arith.constant 0 : index
      %c0_73 = arith.constant 0 : index
      %189 = vector.load %arg15[%188, %c0_72, %c0_73] : memref<8x64x256xf32, #tpu.memory_space<vmem>>, vector<1x64x256xf32>
      %190 = vector.shape_cast %189 : vector<1x64x256xf32> to vector<64x256xf32>
      %cst_74 = arith.constant dense<0.000000e+00> : vector<34x256xf32>
      %191 = tpu.matmul %187, %190, %cst_74 {dimension_numbers = #tpu.dot_dimension_numbers<[1], [0], [0], [1], [0, 0, 1, 1], [], []>} : vector<34x64xf32>, vector<64x256xf32>, vector<34x256xf32> -> vector<34x256xf32>
      %192 = arith.index_cast %arg24 : i32 to index
      %c0_75 = arith.constant 0 : index
      %c0_76 = arith.constant 0 : index
      %193 = vector.load %arg16[%192, %c0_75, %c0_76] : memref<8x1x256xf32, #tpu.memory_space<vmem>>, vector<1x1x256xf32>
      %194 = vector.shape_cast %193 : vector<1x1x256xf32> to vector<1x256xf32>
      %195 = vector.broadcast %194 : vector<1x256xf32> to vector<34x256xf32>
      %196 = arith.addf %191, %195 : vector<34x256xf32>
      %197 = arith.mulf %196, %196 : vector<34x256xf32>
      %198 = arith.mulf %196, %197 : vector<34x256xf32>
      %cst_77 = arith.constant 4.471500e-02 : f32
      %199 = vector.broadcast %cst_77 : f32 to vector<34x256xf32>
      %200 = arith.mulf %199, %198 : vector<34x256xf32>
      %201 = arith.addf %196, %200 : vector<34x256xf32>
      %cst_78 = arith.constant 0.797884583 : f32
      %202 = vector.broadcast %cst_78 : f32 to vector<34x256xf32>
      %203 = arith.mulf %202, %201 : vector<34x256xf32>
      %204 = math.tanh %203 : vector<34x256xf32>
      %cst_79 = arith.constant 1.000000e+00 : f32
      %205 = vector.broadcast %cst_79 : f32 to vector<34x256xf32>
      %206 = arith.addf %205, %204 : vector<34x256xf32>
      %cst_80 = arith.constant 5.000000e-01 : f32
      %207 = vector.broadcast %cst_80 : f32 to vector<34x256xf32>
      %208 = arith.mulf %207, %206 : vector<34x256xf32>
      %209 = arith.mulf %196, %208 : vector<34x256xf32>
      %210 = arith.index_cast %arg24 : i32 to index
      %c0_81 = arith.constant 0 : index
      %c0_82 = arith.constant 0 : index
      %211 = vector.load %arg17[%210, %c0_81, %c0_82] : memref<8x256x64xf32, #tpu.memory_space<vmem>>, vector<1x256x64xf32>
      %212 = vector.shape_cast %211 : vector<1x256x64xf32> to vector<256x64xf32>
      %cst_83 = arith.constant dense<0.000000e+00> : vector<34x64xf32>
      %213 = tpu.matmul %209, %212, %cst_83 {dimension_numbers = #tpu.dot_dimension_numbers<[1], [0], [0], [1], [0, 0, 1, 1], [], []>} : vector<34x256xf32>, vector<256x64xf32>, vector<34x64xf32> -> vector<34x64xf32>
      %214 = arith.index_cast %arg24 : i32 to index
      %c0_84 = arith.constant 0 : index
      %c0_85 = arith.constant 0 : index
      %215 = vector.load %arg18[%214, %c0_84, %c0_85] : memref<8x1x64xf32, #tpu.memory_space<vmem>>, vector<1x1x64xf32>
      %216 = vector.shape_cast %215 : vector<1x1x64xf32> to vector<1x64xf32>
      %217 = vector.broadcast %216 : vector<1x64xf32> to vector<34x64xf32>
      %218 = arith.addf %213, %217 : vector<34x64xf32>
      %219 = arith.addf %159, %218 : vector<34x64xf32>
      scf.yield %219 : vector<34x64xf32>
    }
    %c8_i32_11 = arith.constant 8 : i32
    %13 = vector.extract_strided_slice %12 {offsets = [32, 0], sizes = [2, 64], strides = [1, 1]} : vector<34x64xf32> to vector<2x64xf32>
    %c0_12 = arith.constant 0 : index
    %c0_13 = arith.constant 0 : index
    %14 = vector.load %arg19[%c0_12, %c0_13] : memref<1x64xf32, #tpu.memory_space<vmem>>, vector<1x64xf32>
    %c0_14 = arith.constant 0 : index
    %c0_15 = arith.constant 0 : index
    %15 = vector.load %arg20[%c0_14, %c0_15] : memref<1x64xf32, #tpu.memory_space<vmem>>, vector<1x64xf32>
    %cst_16 = arith.constant dense<0.000000e+00> : vector<2xf32>
    %16 = vector.multi_reduction <add>, %13, %cst_16 [1] : vector<2x64xf32> to vector<2xf32>
    %17 = vector.shape_cast %16 : vector<2xf32> to vector<2x1xf32>
    %cst_17 = arith.constant 6.400000e+01 : f32
    %18 = vector.broadcast %cst_17 : f32 to vector<2x1xf32>
    %19 = arith.divf %17, %18 : vector<2x1xf32>
    %20 = vector.broadcast %19 : vector<2x1xf32> to vector<2x64xf32>
    %21 = arith.subf %13, %20 : vector<2x64xf32>
    %22 = arith.mulf %21, %21 : vector<2x64xf32>
    %cst_18 = arith.constant dense<0.000000e+00> : vector<2xf32>
    %23 = vector.multi_reduction <add>, %22, %cst_18 [1] : vector<2x64xf32> to vector<2xf32>
    %24 = vector.shape_cast %23 : vector<2xf32> to vector<2x1xf32>
    %cst_19 = arith.constant 6.400000e+01 : f32
    %25 = vector.broadcast %cst_19 : f32 to vector<2x1xf32>
    %26 = arith.divf %24, %25 : vector<2x1xf32>
    %27 = vector.broadcast %19 : vector<2x1xf32> to vector<2x64xf32>
    %28 = arith.subf %13, %27 : vector<2x64xf32>
    %cst_20 = arith.constant 9.99999997E-7 : f32
    %29 = vector.broadcast %cst_20 : f32 to vector<2x1xf32>
    %30 = arith.addf %26, %29 : vector<2x1xf32>
    %31 = math.rsqrt %30 : vector<2x1xf32>
    %32 = vector.broadcast %31 : vector<2x1xf32> to vector<2x64xf32>
    %33 = arith.mulf %28, %32 : vector<2x64xf32>
    %34 = vector.broadcast %14 : vector<1x64xf32> to vector<2x64xf32>
    %35 = arith.mulf %33, %34 : vector<2x64xf32>
    %36 = vector.broadcast %15 : vector<1x64xf32> to vector<2x64xf32>
    %37 = arith.addf %35, %36 : vector<2x64xf32>
    %c0_21 = arith.constant 0 : index
    %c0_22 = arith.constant 0 : index
    %38 = vector.load %arg21[%c0_21, %c0_22] : memref<64x128xf32, #tpu.memory_space<vmem>>, vector<64x128xf32>
    %cst_23 = arith.constant dense<0.000000e+00> : vector<2x128xf32>
    %39 = tpu.matmul %37, %38, %cst_23 {dimension_numbers = #tpu.dot_dimension_numbers<[1], [0], [0], [1], [0, 0, 1, 1], [], []>} : vector<2x64xf32>, vector<64x128xf32>, vector<2x128xf32> -> vector<2x128xf32>
    %c0_24 = arith.constant 0 : index
    %c0_25 = arith.constant 0 : index
    %40 = vector.load %arg22[%c0_24, %c0_25] : memref<1x128xf32, #tpu.memory_space<vmem>>, vector<1x128xf32>
    %41 = vector.broadcast %40 : vector<1x128xf32> to vector<2x128xf32>
    %42 = arith.addf %39, %41 : vector<2x128xf32>
    %c0_26 = arith.constant 0 : index
    %c0_27 = arith.constant 0 : index
    %43 = vector.load %arg23[%c0_26, %c0_27] : memref<2x128xf32, #tpu.memory_space<vmem>>, vector<2x128xf32>
    tpu.vector_store %arg23[%c0_26, %c0_27], %42 {strides = array<i32>} : memref<2x128xf32, #tpu.memory_space<vmem>>, vector<2x128xf32>,
    return
  }
  func.func @transform_0(%arg0: i32) -> (i32, i32) {
    %c0_i32 = arith.constant 0 : i32
    %c0_i32_0 = arith.constant 0 : i32
    %c0_i32_1 = arith.constant 0 : i32
    return %c0_i32, %c0_i32_0 : i32, i32
  }
  func.func @transform_1(%arg0: i32) -> (i32, i32) {
    %c0_i32 = arith.constant 0 : i32
    %c0_i32_0 = arith.constant 0 : i32
    %c0_i32_1 = arith.constant 0 : i32
    return %c0_i32, %c0_i32_0 : i32, i32
  }
  func.func @transform_2(%arg0: i32) -> (i32, i32) {
    %c0_i32 = arith.constant 0 : i32
    %c0_i32_0 = arith.constant 0 : i32
    %c0_i32_1 = arith.constant 0 : i32
    return %c0_i32, %c0_i32_0 : i32, i32
  }
  func.func @transform_3(%arg0: i32) -> (i32, i32) {
    %c0_i32 = arith.constant 0 : i32
    %c0_i32_0 = arith.constant 0 : i32
    %c0_i32_1 = arith.constant 0 : i32
    return %c0_i32, %c0_i32_0 : i32, i32
  }
  func.func @transform_4(%arg0: i32) -> (i32, i32) {
    %c0_i32 = arith.constant 0 : i32
    %c0_i32_0 = arith.constant 0 : i32
    %c0_i32_1 = arith.constant 0 : i32
    return %c0_i32, %c0_i32_0 : i32, i32
  }
  func.func @transform_5(%arg0: i32) -> (i32, i32) {
    %c0_i32 = arith.constant 0 : i32
    %c0_i32_0 = arith.constant 0 : i32
    %c0_i32_1 = arith.constant 0 : i32
    return %c0_i32, %c0_i32_0 : i32, i32
  }
  func.func @transform_6(%arg0: i32) -> (i32, i32, i32) {
    %c0_i32 = arith.constant 0 : i32
    %c0_i32_0 = arith.constant 0 : i32
    %c0_i32_1 = arith.constant 0 : i32
    %c0_i32_2 = arith.constant 0 : i32
    return %c0_i32, %c0_i32_0, %c0_i32_1 : i32, i32, i32
  }
  func.func @transform_7(%arg0: i32) -> (i32, i32, i32) {
    %c0_i32 = arith.constant 0 : i32
    %c0_i32_0 = arith.constant 0 : i32
    %c0_i32_1 = arith.constant 0 : i32
    %c0_i32_2 = arith.constant 0 : i32
    return %c0_i32, %c0_i32_0, %c0_i32_1 : i32, i32, i32
  }
  func.func @transform_8(%arg0: i32) -> (i32, i32, i32) {
    %c0_i32 = arith.constant 0 : i32
    %c0_i32_0 = arith.constant 0 : i32
    %c0_i32_1 = arith.constant 0 : i32
    %c0_i32_2 = arith.constant 0 : i32
    return %c0_i32, %c0_i32_0, %c0_i32_1 : i32, i32, i32
  }
  func.func @transform_9(%arg0: i32) -> (i32, i32, i32) {
    %c0_i32 = arith.constant 0 : i32
    %c0_i32_0 = arith.constant 0 : i32
    %c0_i32_1 = arith.constant 0 : i32
    %c0_i32_2 = arith.constant 0 : i32
    return %c0_i32, %c0_i32_0, %c0_i32_1 : i32, i32, i32
  }
  func.func @transform_10(%arg0: i32) -> (i32, i32, i32) {
    %c0_i32 = arith.constant 0 : i32
    %c0_i32_0 = arith.constant 0 : i32
    %c0_i32_1 = arith.constant 0 : i32
    %c0_i32_2 = arith.constant 0 : i32
    return %c0_i32, %c0_i32_0, %c0_i32_1 : i32, i32, i32
  }
  func.func @transform_11(%arg0: i32) -> (i32, i32, i32) {
    %c0_i32 = arith.constant 0 : i32
    %c0_i32_0 = arith.constant 0 : i32
    %c0_i32_1 = arith.constant 0 : i32
    %c0_i32_2 = arith.constant 0 : i32
    return %c0_i32, %c0_i32_0, %c0_i32_1 : i32, i32, i32
  }
  func.func @transform_12(%arg0: i32) -> (i32, i32, i32) {
    %c0_i32 = arith.constant 0 : i32
    %c0_i32_0 = arith.constant 0 : i32
    %c0_i32_1 = arith.constant 0 : i32
    %c0_i32_2 = arith.constant 0 : i32
    return %c0_i32, %c0_i32_0, %c0_i32_1 : i32, i32, i32
  }
  func.func @transform_13(%arg0: i32) -> (i32, i32, i32) {
    %c0_i32 = arith.constant 0 : i32
    %c0_i32_0 = arith.constant 0 : i32
    %c0_i32_1 = arith.constant 0 : i32
    %c0_i32_2 = arith.constant 0 : i32
    return %c0_i32, %c0_i32_0, %c0_i32_1 : i32, i32, i32
  }
  func.func @transform_14(%arg0: i32) -> (i32, i32, i32) {
    %c0_i32 = arith.constant 0 : i32
    %c0_i32_0 = arith.constant 0 : i32
    %c0_i32_1 = arith.constant 0 : i32
    %c0_i32_2 = arith.constant 0 : i32
    return %c0_i32, %c0_i32_0, %c0_i32_1 : i32, i32, i32
  }
  func.func @transform_15(%arg0: i32) -> (i32, i32, i32) {
    %c0_i32 = arith.constant 0 : i32
    %c0_i32_0 = arith.constant 0 : i32
    %c0_i32_1 = arith.constant 0 : i32
    %c0_i32_2 = arith.constant 0 : i32
    return %c0_i32, %c0_i32_0, %c0_i32_1 : i32, i32, i32
  }
  func.func @transform_16(%arg0: i32) -> (i32, i32, i32) {
    %c0_i32 = arith.constant 0 : i32
    %c0_i32_0 = arith.constant 0 : i32
    %c0_i32_1 = arith.constant 0 : i32
    %c0_i32_2 = arith.constant 0 : i32
    return %c0_i32, %c0_i32_0, %c0_i32_1 : i32, i32, i32
  }
  func.func @transform_17(%arg0: i32) -> (i32, i32, i32) {
    %c0_i32 = arith.constant 0 : i32
    %c0_i32_0 = arith.constant 0 : i32
    %c0_i32_1 = arith.constant 0 : i32
    %c0_i32_2 = arith.constant 0 : i32
    return %c0_i32, %c0_i32_0, %c0_i32_1 : i32, i32, i32
  }
  func.func @transform_18(%arg0: i32) -> (i32, i32) {
    %c0_i32 = arith.constant 0 : i32
    %c0_i32_0 = arith.constant 0 : i32
    %c0_i32_1 = arith.constant 0 : i32
    return %c0_i32, %c0_i32_0 : i32, i32
  }
  func.func @transform_19(%arg0: i32) -> (i32, i32) {
    %c0_i32 = arith.constant 0 : i32
    %c0_i32_0 = arith.constant 0 : i32
    %c0_i32_1 = arith.constant 0 : i32
    return %c0_i32, %c0_i32_0 : i32, i32
  }
  func.func @transform_20(%arg0: i32) -> (i32, i32) {
    %c0_i32 = arith.constant 0 : i32
    %c0_i32_0 = arith.constant 0 : i32
    %c0_i32_1 = arith.constant 0 : i32
    return %c0_i32, %c0_i32_0 : i32, i32
  }
  func.func @transform_21(%arg0: i32) -> (i32, i32) {
    %c0_i32 = arith.constant 0 : i32
    %c0_i32_0 = arith.constant 0 : i32
    %c0_i32_1 = arith.constant 0 : i32
    return %c0_i32, %c0_i32_0 : i32, i32
  }
  func.func @transform_22(%arg0: i32) -> (i32, i32) {
    %c0_i32 = arith.constant 0 : i32
    %c0_i32_0 = arith.constant 0 : i32
    %c0_i32_1 = arith.constant 0 : i32
    return %c0_i32, %c0_i32_0 : i32, i32
  }
}

</mosaic_0001>

<llo_original>
// kernel: vit_small_forward.1
$region0: #{vit_small_forward.1}
  #allocation0 [shape = 'u32[]', space=smem, size = 0x4, offset = 0x4, fixed_abs, tag = 'smem constant byte address 0x4 - core index']
  #allocation1 [shape = 'u32[72,128]{1,0:T(1,128)}', space=vmem, size = 0x9000, scoped, tag = 'internal scratch']
  %s0 = inlined_call_operand.vmem [shape: f32[32,48], index: 0, kind: input, shape index: {}]
  %s1 = inlined_call_operand.vmem [shape: f32[48,64], index: 1, kind: input, shape index: {}]
  %s2 = inlined_call_operand.vmem [shape: f32[1,64], index: 2, kind: input, shape index: {}]
  %s3 = inlined_call_operand.vmem [shape: f32[32,64], index: 3, kind: input, shape index: {}]
  %s4 = inlined_call_operand.vmem [shape: f32[2,64], index: 4, kind: input, shape index: {}]
  %s5 = inlined_call_operand.vmem [shape: f32[34,34], index: 5, kind: input, shape index: {}]
  %s6 = inlined_call_operand.vmem [shape: f32[8,1,64], index: 6, kind: input, shape index: {}]
  %s7 = inlined_call_operand.vmem [shape: f32[8,1,64], index: 7, kind: input, shape index: {}]
  %s8 = inlined_call_operand.vmem [shape: f32[8,64,192], index: 8, kind: input, shape index: {}]
  %s9 = inlined_call_operand.vmem [shape: f32[8,1,192], index: 9, kind: input, shape index: {}]
  %s10 = inlined_call_operand.vmem [shape: f32[8,64,64], index: 10, kind: input, shape index: {}]
  %s11 = inlined_call_operand.vmem [shape: f32[8,1,64], index: 11, kind: input, shape index: {}]
  %s12 = inlined_call_operand.vmem [shape: f32[8,1,64], index: 12, kind: input, shape index: {}]
  %s13 = inlined_call_operand.vmem [shape: f32[8,1,64], index: 13, kind: input, shape index: {}]
  %s14 = inlined_call_operand.vmem [shape: f32[8,64,256], index: 14, kind: input, shape index: {}]
  %s15 = inlined_call_operand.vmem [shape: f32[8,1,256], index: 15, kind: input, shape index: {}]
  %s16 = inlined_call_operand.vmem [shape: f32[8,256,64], index: 16, kind: input, shape index: {}]
  %s17 = inlined_call_operand.vmem [shape: f32[8,1,64], index: 17, kind: input, shape index: {}]
  %s18 = inlined_call_operand.vmem [shape: f32[1,64], index: 18, kind: input, shape index: {}]
  %s19 = inlined_call_operand.vmem [shape: f32[1,64], index: 19, kind: input, shape index: {}]
  %s20 = inlined_call_operand.vmem [shape: f32[64,128], index: 20, kind: input, shape index: {}]
  %s21 = inlined_call_operand.vmem [shape: f32[1,128], index: 21, kind: input, shape index: {}]
  %s22 = inlined_call_operand.hbm [shape: f32[2,128], index: 22, kind: output, shape index: {}]
  %s23 = sld [smem:[#allocation0]]
  $region105: #{vit_small_forward.1} parent=0
    _
  %s25 = ssub.s32 1, %s23
  %s26 = scalar_select 0, %s25, %s23
  $region1: #{vit_small_forward.1} parent=0
    #allocation2 [shape = 'u8[1024]{0}', space=vmem, size = 0x400, scoped, tag = 'output window, operand 0, single buffered']
    #allocation3 [shape = 's32[1]{0}', space=sflag, size = 0x4, scoped, tag = 'scoped memory for vit_small_forward.1']
    %27 = vsyncpa [#allocation3], 0
    // Predicated region
    $region2: #{vit_small_forward.1} parent=1 // pred_check
      _
    $region3: #{vit_small_forward.1} parent=1 // pred_check_branch
      %29 = sbr.rel (0) target = $region5
    $region4: #{vit_small_forward.1} parent=1 // pred_region
      _
    $region5: #{vit_small_forward.1} parent=1 // pred_fallthru
      _
    // Predicated region
    $region6: #{vit_small_forward.1} parent=1 // pred_check
      _
    $region7: #{vit_small_forward.1} parent=1 // pred_check_branch
      %31 = sbr.rel (0) target = $region9
    $region8: #{vit_small_forward.1} parent=1 // pred_region
      _
    $region9: #{vit_small_forward.1} parent=1 // pred_fallthru
      _
    // Predicated region
    $region10: #{vit_small_forward.1} parent=1 // pred_check
      _
    $region11: #{vit_small_forward.1} parent=1 // pred_check_branch
      %33 = sbr.rel (0) target = $region13
    $region12: #{vit_small_forward.1} parent=1 // pred_region
      _
    $region13: #{vit_small_forward.1} parent=1 // pred_fallthru
      _
    // Predicated region
    $region14: #{vit_small_forward.1} parent=1 // pred_check
      _
    $region15: #{vit_small_forward.1} parent=1 // pred_check_branch
      %35 = sbr.rel (0) target = $region17
    $region16: #{vit_small_forward.1} parent=1 // pred_region
      _
    $region17: #{vit_small_forward.1} parent=1 // pred_fallthru
      _
    // Predicated region
    $region18: #{vit_small_forward.1} parent=1 // pred_check
      _
    $region19: #{vit_small_forward.1} parent=1 // pred_check_branch
      %37 = sbr.rel (0) target = $region21
    $region20: #{vit_small_forward.1} parent=1 // pred_region
      _
    $region21: #{vit_small_forward.1} parent=1 // pred_fallthru
      _
    // Predicated region
    $region22: #{vit_small_forward.1} parent=1 // pred_check
      _
    $region23: #{vit_small_forward.1} parent=1 // pred_check_branch
      %39 = sbr.rel (0) target = $region25
    $region24: #{vit_small_forward.1} parent=1 // pred_region
      _
    $region25: #{vit_small_forward.1} parent=1 // pred_fallthru
      _
    // Predicated region
    $region26: #{vit_small_forward.1} parent=1 // pred_check
      _
    $region27: #{vit_small_forward.1} parent=1 // pred_check_branch
      %41 = sbr.rel (0) target = $region29
    $region28: #{vit_small_forward.1} parent=1 // pred_region
      _
    $region29: #{vit_small_forward.1} parent=1 // pred_fallthru
      _
    // Predicated region
    $region30: #{vit_small_forward.1} parent=1 // pred_check
      _
    $region31: #{vit_small_forward.1} parent=1 // pred_check_branch
      %43 = sbr.rel (0) target = $region33
    $region32: #{vit_small_forward.1} parent=1 // pred_region
      _
    $region33: #{vit_small_forward.1} parent=1 // pred_fallthru
      _
    // Predicated region
    $region34: #{vit_small_forward.1} parent=1 // pred_check
      _
    $region35: #{vit_small_forward.1} parent=1 // pred_check_branch
      %45 = sbr.rel (0) target = $region37
    $region36: #{vit_small_forward.1} parent=1 // pred_region
      _
    $region37: #{vit_small_forward.1} parent=1 // pred_fallthru
      _
    // Predicated region
    $region38: #{vit_small_forward.1} parent=1 // pred_check
      _
    $region39: #{vit_small_forward.1} parent=1 // pred_check_branch
      %47 = sbr.rel (0) target = $region41
    $region40: #{vit_small_forward.1} parent=1 // pred_region
      _
    $region41: #{vit_small_forward.1} parent=1 // pred_fallthru
      _
    // Predicated region
    $region42: #{vit_small_forward.1} parent=1 // pred_check
      _
    $region43: #{vit_small_forward.1} parent=1 // pred_check_branch
      %49 = sbr.rel (0) target = $region45
    $region44: #{vit_small_forward.1} parent=1 // pred_region
      _
    $region45: #{vit_small_forward.1} parent=1 // pred_fallthru
      _
    // Predicated region
    $region46: #{vit_small_forward.1} parent=1 // pred_check
      _
    $region47: #{vit_small_forward.1} parent=1 // pred_check_branch
      %51 = sbr.rel (0) target = $region49
    $region48: #{vit_small_forward.1} parent=1 // pred_region
      _
    $region49: #{vit_small_forward.1} parent=1 // pred_fallthru
      _
    // Predicated region
    $region50: #{vit_small_forward.1} parent=1 // pred_check
      _
    $region51: #{vit_small_forward.1} parent=1 // pred_check_branch
      %53 = sbr.rel (0) target = $region53
    $region52: #{vit_small_forward.1} parent=1 // pred_region
      _
    $region53: #{vit_small_forward.1} parent=1 // pred_fallthru
      _
    // Predicated region
    $region54: #{vit_small_forward.1} parent=1 // pred_check
      _
    $region55: #{vit_small_forward.1} parent=1 // pred_check_branch
      %55 = sbr.rel (0) target = $region57
    $region56: #{vit_small_forward.1} parent=1 // pred_region
      _
    $region57: #{vit_small_forward.1} parent=1 // pred_fallthru
      _
    // Predicated region
    $region58: #{vit_small_forward.1} parent=1 // pred_check
      _
    $region59: #{vit_small_forward.1} parent=1 // pred_check_branch
      %57 = sbr.rel (0) target = $region61
    $region60: #{vit_small_forward.1} parent=1 // pred_region
      _
    $region61: #{vit_small_forward.1} parent=1 // pred_fallthru
      _
    // Predicated region
    $region62: #{vit_small_forward.1} parent=1 // pred_check
      _
    $region63: #{vit_small_forward.1} parent=1 // pred_check_branch
      %59 = sbr.rel (0) target = $region65
    $region64: #{vit_small_forward.1} parent=1 // pred_region
      _
    $region65: #{vit_small_forward.1} parent=1 // pred_fallthru
      _
    // Predicated region
    $region66: #{vit_small_forward.1} parent=1 // pred_check
      _
    $region67: #{vit_small_forward.1} parent=1 // pred_check_branch
      %61 = sbr.rel (0) target = $region69
    $region68: #{vit_small_forward.1} parent=1 // pred_region
      _
    $region69: #{vit_small_forward.1} parent=1 // pred_fallthru
      _
    // Predicated region
    $region70: #{vit_small_forward.1} parent=1 // pred_check
      _
    $region71: #{vit_small_forward.1} parent=1 // pred_check_branch
      %63 = sbr.rel (0) target = $region73
    $region72: #{vit_small_forward.1} parent=1 // pred_region
      _
    $region73: #{vit_small_forward.1} parent=1 // pred_fallthru
      _
    // Predicated region
    $region74: #{vit_small_forward.1} parent=1 // pred_check
      _
    $region75: #{vit_small_forward.1} parent=1 // pred_check_branch
      %65 = sbr.rel (0) target = $region77
    $region76: #{vit_small_forward.1} parent=1 // pred_region
      _
    $region77: #{vit_small_forward.1} parent=1 // pred_fallthru
      _
    // Predicated region
    $region78: #{vit_small_forward.1} parent=1 // pred_check
      _
    $region79: #{vit_small_forward.1} parent=1 // pred_check_branch
      %67 = sbr.rel (0) target = $region81
    $region80: #{vit_small_forward.1} parent=1 // pred_region
      _
    $region81: #{vit_small_forward.1} parent=1 // pred_fallthru
      _
    // Predicated region
    $region82: #{vit_small_forward.1} parent=1 // pred_check
      _
    $region83: #{vit_small_forward.1} parent=1 // pred_check_branch
      %69 = sbr.rel (0) target = $region85
    $region84: #{vit_small_forward.1} parent=1 // pred_region
      _
    $region85: #{vit_small_forward.1} parent=1 // pred_fallthru
      _
    // Predicated region
    $region86: #{vit_small_forward.1} parent=1 // pred_check
      _
    $region87: #{vit_small_forward.1} parent=1 // pred_check_branch
      %71 = sbr.rel (0) target = $region89
    $region88: #{vit_small_forward.1} parent=1 // pred_region
      _
    $region89: #{vit_small_forward.1} parent=1 // pred_fallthru
      _
    %v72 = vld [vmem:[%s0] sm:$0xff]
    %v73 = vld [vmem:[%s0 + $0x8] sm:$0xff]
    %v74 = vld [vmem:[%s0 + $0x10] sm:$0xff]
    %v75 = vld [vmem:[%s0 + $0x18] sm:$0xff]
    %v76 = vld [vmem:[%s1] sm:$0xff]
    %v77 = vld [vmem:[%s1 + $0x8] sm:$0xff]
    %v78 = vld [vmem:[%s1 + $0x10] sm:$0xff]
    %v79 = vld [vmem:[%s1 + $0x18] sm:$0xff]
    %v80 = vld [vmem:[%s1 + $0x20] sm:$0xff]
    %v81 = vld [vmem:[%s1 + $0x28] sm:$0xff]
    %v82 = vld [vmem:[%s2] sm:$0x1]
    %v84 = vperm.slane %v82, 0
    %vm86 = vcmask 392192
    %v88 = vsel %vm86, %v72, 0
    %v91 = vsel %vm86, %v73, 0
    %v94 = vsel %vm86, %v74, 0
    %v97 = vsel %vm86, %v75, 0
    %99 = vmatpush.msra.mxu0 0.0
    %100 = vmatpush.msra.mxu0 0.0
    %101 = vmatpush.msra.mxu0 0.0
    %102 = vmatpush.msra.mxu0 0.0
    %103 = vmatpush.msra.mxu0 0.0
    %104 = vmatpush.msra.mxu0 0.0
    %105 = vmatpush.msra.mxu0 0.0
    %106 = vmatpush.msra.mxu0 0.0
    %107 = vmatpush.msra.mxu0 0.0
    %108 = vmatpush.msra.mxu0 0.0
    %109 = vmatpush.msra.mxu0 %v81
    %110 = vmatpush.msra.mxu0 %v80
    %111 = vmatpush.msra.mxu0 %v79
    %112 = vmatpush.msra.mxu0 %v78
    %113 = vmatpush.msra.mxu0 %v77
    %114 = vmatpush.msra.mxu0 %v76
    %115 = vmatmul.f32.gmra.mxu0 %v88
    %v116 = vpop.f32.mrf.mxu0
    %v117 = vadd.f32 %v84, %v116
    %118 = vmatmul.f32.gmra.mxu0 %v91
    %v119 = vpop.f32.mrf.mxu0
    %v120 = vadd.f32 %v84, %v119
    %121 = vmatmul.f32.gmra.mxu0 %v94
    %v122 = vpop.f32.mrf.mxu0
    %v123 = vadd.f32 %v84, %v122
    %124 = vmatmul.f32.gmra.mxu0 %v97
    %v125 = vpop.f32.mrf.mxu0
    %v126 = vadd.f32 %v84, %v125
    %127 = vdwg.mxu0
    %v128 = vld [vmem:[%s3] sm:$0xff]
    %v129 = vld [vmem:[%s3 + $0x8] sm:$0xff]
    %v130 = vld [vmem:[%s3 + $0x10] sm:$0xff]
    %v131 = vld [vmem:[%s3 + $0x18] sm:$0xff]
    %v132 = vadd.f32 %v117, %v128
    %v133 = vadd.f32 %v120, %v129
    %v134 = vadd.f32 %v123, %v130
    %v135 = vadd.f32 %v126, %v131
    %v136 = vld [vmem:[%s4] sm:$0x3]
    %v137 = vld [vmem:[%s5] sm:$0xff]
    %v138 = vld [vmem:[%s5 + $0x8] sm:$0xff]
    %v139 = vld [vmem:[%s5 + $0x10] sm:$0xff]
    %v140 = vld [vmem:[%s5 + $0x18] sm:$0xff]
    %v141 = vld [vmem:[%s5 + $0x20] sm:$0x3]
    loop: start=0, step=1, limit=8
    $region90: #{vit_small_forward.1} parent=1 // loop_pre_header
      _
    $region91: #{vit_small_forward.1} parent=1 // loop_header
      %s143 = sphi 0, %s147
      %p144 = scmp.ge.s32.totalorder %s143, 8
      %v148 = vphi %v132, %v1723
      %v149 = vphi %v133, %v1724
      %v150 = vphi %v134, %v1725
      %v151 = vphi %v135, %v1726
      %v152 = vphi %v136, %v1727
    $region92: #{vit_small_forward.1} parent=1 // loop_header_branch
      %146 = sbr.rel (%p144) target = $region96
    $region93: #{vit_small_forward.1} parent=1 // loop_body
      %s153 = scalar_lea.vmem %s6, %s143
      %v154 = vld [vmem:[%s153] sm:$0x1]
      %s155 = scalar_lea.vmem %s7, %s143
      %v156 = vld [vmem:[%s155] sm:$0x1]
      %vm157 = vcmask 523264
      %v158 = vsel %vm157, %v148, 0.0
      %159 = vadd.xlane.f32.xlu0 %v158
      %v160 = vpop.xlane.xlu0 %159
      %v161 = vsel %vm157, %v149, 0.0
      %162 = vadd.xlane.f32.xlu0 %v161
      %v163 = vpop.xlane.xlu0 %162
      %v164 = vsel %vm157, %v150, 0.0
      %165 = vadd.xlane.f32.xlu0 %v164
      %v166 = vpop.xlane.xlu0 %165
      %v167 = vsel %vm157, %v151, 0.0
      %168 = vadd.xlane.f32.xlu0 %v167
      %v169 = vpop.xlane.xlu0 %168
      %vm170 = vcmask 517120
      %v171 = vsel %vm170, %v152, 0.0
      %172 = vadd.xlane.f32.xlu0 %v171
      %v173 = vpop.xlane.xlu0 %172
      %v174 = vrcp.pop 64.0
      %v175 = vmul.f32 64.0, %v174
      %v176 = vsub.f32 1.0, %v175
      %v177 = vmul.f32 %v174, %v176
      %v178 = vadd.f32 %v174, %v177
      %vm179 = vweird.f32 %v174
      %v180 = vsel %vm179, %v174, %v178
      %v181 = vmul.f32 %v160, %v180
      %v182 = vmul.f32 %v163, %v180
      %v183 = vmul.f32 %v166, %v180
      %v184 = vmul.f32 %v169, %v180
      %v185 = vmul.f32 %v173, %v180
      %v186 = vsub.f32 %v148, %v181
      %v187 = vsub.f32 %v149, %v182
      %v188 = vsub.f32 %v150, %v183
      %v189 = vsub.f32 %v151, %v184
      %v190 = vsub.f32 %v152, %v185
      %v191 = vmul.f32 %v186, %v186
      %v192 = vmul.f32 %v187, %v187
      %v193 = vmul.f32 %v188, %v188
      %v194 = vmul.f32 %v189, %v189
      %v195 = vmul.f32 %v190, %v190
      %v196 = vsel %vm157, %v191, 0.0
      %197 = vadd.xlane.f32.xlu0 %v196
      %v198 = vpop.xlane.xlu0 %197
      %v199 = vsel %vm157, %v192, 0.0
      %200 = vadd.xlane.f32.xlu0 %v199
      %v201 = vpop.xlane.xlu0 %200
      %v202 = vsel %vm157, %v193, 0.0
      %203 = vadd.xlane.f32.xlu0 %v202
      %v204 = vpop.xlane.xlu0 %203
      %v205 = vsel %vm157, %v194, 0.0
      %206 = vadd.xlane.f32.xlu0 %v205
      %v207 = vpop.xlane.xlu0 %206
      %v208 = vsel %vm170, %v195, 0.0
      %209 = vadd.xlane.f32.xlu0 %v208
      %v210 = vpop.xlane.xlu0 %209
      %v211 = vmul.f32 %v198, %v180
      %v212 = vmul.f32 %v201, %v180
      %v213 = vmul.f32 %v204, %v180
      %v214 = vmul.f32 %v207, %v180
      %v215 = vmul.f32 %v210, %v180
      %v216 = vadd.f32 %v211, 1e-06
      %v217 = vadd.f32 %v212, 1e-06
      %v218 = vadd.f32 %v213, 1e-06
      %v219 = vadd.f32 %v214, 1e-06
      %v220 = vadd.f32 %v215, 1e-06
      %v221 = vrsqrt.pop %v216
      %v222 = vmul.f32 %v221, %v216
      %v223 = vmul.f32 %v222, %v221
      %v224 = vmul.f32 0.5, %v223
      %v225 = vsub.f32 1.5, %v224
      %v226 = vmul.f32 %v221, %v225
      %vm227 = vweird.f32 %v216
      %vm228 = vweird.f32 %v221
      %vm229 = vmor %vm227, %vm228
      %v230 = vsel %vm229, %v221, %v226
      %v231 = vrsqrt.pop %v217
      %v232 = vmul.f32 %v231, %v217
      %v233 = vmul.f32 %v232, %v231
      %v234 = vmul.f32 0.5, %v233
      %v235 = vsub.f32 1.5, %v234
      %v236 = vmul.f32 %v231, %v235
      %vm237 = vweird.f32 %v217
      %vm238 = vweird.f32 %v231
      %vm239 = vmor %vm237, %vm238
      %v240 = vsel %vm239, %v231, %v236
      %v241 = vrsqrt.pop %v218
      %v242 = vmul.f32 %v241, %v218
      %v243 = vmul.f32 %v242, %v241
      %v244 = vmul.f32 0.5, %v243
      %v245 = vsub.f32 1.5, %v244
      %v246 = vmul.f32 %v241, %v245
      %vm247 = vweird.f32 %v218
      %vm248 = vweird.f32 %v241
      %vm249 = vmor %vm247, %vm248
      %v250 = vsel %vm249, %v241, %v246
      %v251 = vrsqrt.pop %v219
      %v252 = vmul.f32 %v251, %v219
      %v253 = vmul.f32 %v252, %v251
      %v254 = vmul.f32 0.5, %v253
      %v255 = vsub.f32 1.5, %v254
      %v256 = vmul.f32 %v251, %v255
      %vm257 = vweird.f32 %v219
      %vm258 = vweird.f32 %v251
      %vm259 = vmor %vm257, %vm258
      %v260 = vsel %vm259, %v251, %v256
      %v261 = vrsqrt.pop %v220
      %v262 = vmul.f32 %v261, %v220
      %v263 = vmul.f32 %v262, %v261
      %v264 = vmul.f32 0.5, %v263
      %v265 = vsub.f32 1.5, %v264
      %v266 = vmul.f32 %v261, %v265
      %vm267 = vweird.f32 %v220
      %vm268 = vweird.f32 %v261
      %vm269 = vmor %vm267, %vm268
      %v270 = vsel %vm269, %v261, %v266
      %v271 = vmul.f32 %v186, %v230
      %v272 = vmul.f32 %v187, %v240
      %v273 = vmul.f32 %v188, %v250
      %v274 = vmul.f32 %v189, %v260
      %v275 = vmul.f32 %v190, %v270
      %v277 = vperm.slane %v154, 0
      %v279 = vmul.f32 %v271, %v277
      %v280 = vmul.f32 %v272, %v277
      %v281 = vmul.f32 %v273, %v277
      %v282 = vmul.f32 %v274, %v277
      %v283 = vmul.f32 %v275, %v277
      %v285 = vperm.slane %v156, 0
      %v287 = vadd.f32 %v279, %v285
      %v288 = vadd.f32 %v280, %v285
      %v289 = vadd.f32 %v281, %v285
      %v290 = vadd.f32 %v282, %v285
      %v291 = vadd.f32 %v283, %v285
      %s292 = smul.u32 %s143, 16
      %s293 = smul.addr %s292, 8
      %s294 = scalar_lea.vmem %s8, %s293
      %v295 = vld [vmem:[%s294] sm:$0xff]
      %v296 = vld [vmem:[%s294 + $0x8] sm:$0xff]
      %v297 = vld [vmem:[%s294 + $0x10] sm:$0xff]
      %v298 = vld [vmem:[%s294 + $0x18] sm:$0xff]
      %v299 = vld [vmem:[%s294 + $0x20] sm:$0xff]
      %v300 = vld [vmem:[%s294 + $0x28] sm:$0xff]
      %v301 = vld [vmem:[%s294 + $0x30] sm:$0xff]
      %v302 = vld [vmem:[%s294 + $0x38] sm:$0xff]
      %v303 = vld [vmem:[%s294 + $0x40] sm:$0xff]
      %v304 = vld [vmem:[%s294 + $0x48] sm:$0xff]
      %v305 = vld [vmem:[%s294 + $0x50] sm:$0xff]
      %v306 = vld [vmem:[%s294 + $0x58] sm:$0xff]
      %v307 = vld [vmem:[%s294 + $0x60] sm:$0xff]
      %v308 = vld [vmem:[%s294 + $0x68] sm:$0xff]
      %v309 = vld [vmem:[%s294 + $0x70] sm:$0xff]
      %v310 = vld [vmem:[%s294 + $0x78] sm:$0xff]
      %s311 = smul.u32 %s143, 2
      %s312 = scalar_lea.vmem %s9, %s311
      %v313 = vld [vmem:[%s312] sm:$0x3]
      %v315 = vperm.slane %v313, 0
      %v316 = vperm.slane %v313, 1
      %v320 = vsel %vm157, %v287, 0
      %v323 = vsel %vm157, %v288, 0
      %v326 = vsel %vm157, %v289, 0
      %v329 = vsel %vm157, %v290, 0
      %v332 = vsel %vm157, %v291, 0
      %334 = vmatpush.msra.mxu0 0.0
      %335 = vmatpush.msra.mxu0 0.0
      %336 = vmatpush.msra.mxu0 0.0
      %337 = vmatpush.msra.mxu0 0.0
      %338 = vmatpush.msra.mxu0 0.0
      %339 = vmatpush.msra.mxu0 0.0
      %340 = vmatpush.msra.mxu0 0.0
      %341 = vmatpush.msra.mxu0 0.0
      %342 = vmatpush.msra.mxu0 %v309
      %343 = vmatpush.msra.mxu0 %v307
      %344 = vmatpush.msra.mxu0 %v305
      %345 = vmatpush.msra.mxu0 %v303
      %346 = vmatpush.msra.mxu0 %v301
      %347 = vmatpush.msra.mxu0 %v299
      %348 = vmatpush.msra.mxu0 %v297
      %349 = vmatpush.msra.mxu0 %v295
      %350 = vmatmul.f32.gmra.mxu0 %v320
      %v351 = vpop.f32.mrf.mxu0
      %v352 = vadd.f32 %v315, %v351
      %353 = vmatmul.f32.gmra.mxu0 %v323
      %v354 = vpop.f32.mrf.mxu0
      %v355 = vadd.f32 %v315, %v354
      %356 = vmatmul.f32.gmra.mxu0 %v326
      %v357 = vpop.f32.mrf.mxu0
      %v358 = vadd.f32 %v315, %v357
      %359 = vmatmul.f32.gmra.mxu0 %v329
      %v360 = vpop.f32.mrf.mxu0
      %v361 = vadd.f32 %v315, %v360
      %362 = vmatmul.f32.gmra.mxu0 %v332
      %v363 = vpop.f32.mrf.mxu0
      %v364 = vadd.f32 %v315, %v363
      %365 = vdwg.mxu0
      %366 = vmatpush.msra.mxu0 0.0
      %367 = vmatpush.msra.mxu0 0.0
      %368 = vmatpush.msra.mxu0 0.0
      %369 = vmatpush.msra.mxu0 0.0
      %370 = vmatpush.msra.mxu0 0.0
      %371 = vmatpush.msra.mxu0 0.0
      %372 = vmatpush.msra.mxu0 0.0
      %373 = vmatpush.msra.mxu0 0.0
      %374 = vmatpush.msra.mxu0 %v310
      %375 = vmatpush.msra.mxu0 %v308
      %376 = vmatpush.msra.mxu0 %v306
      %377 = vmatpush.msra.mxu0 %v304
      %378 = vmatpush.msra.mxu0 %v302
      %379 = vmatpush.msra.mxu0 %v300
      %380 = vmatpush.msra.mxu0 %v298
      %381 = vmatpush.msra.mxu0 %v296
      %382 = vmatmul.f32.gmra.mxu0 %v320
      %v383 = vpop.f32.mrf.mxu0
      %v384 = vadd.f32 %v316, %v383
      %385 = vmatmul.f32.gmra.mxu0 %v323
      %v386 = vpop.f32.mrf.mxu0
      %v387 = vadd.f32 %v316, %v386
      %388 = vmatmul.f32.gmra.mxu0 %v326
      %v389 = vpop.f32.mrf.mxu0
      %v390 = vadd.f32 %v316, %v389
      %391 = vmatmul.f32.gmra.mxu0 %v329
      %v392 = vpop.f32.mrf.mxu0
      %v393 = vadd.f32 %v316, %v392
      %394 = vmatmul.f32.gmra.mxu0 %v332
      %v395 = vpop.f32.mrf.mxu0
      %v396 = vadd.f32 %v316, %v395
      %397 = vdwg.mxu0
      %403 = vrot.lane.b32.xlu0 %v352, 64
      %v404 = vpop.permute.xlu0 %403
      %405 = vrot.lane.b32.xlu0 %v355, 64
      %v406 = vpop.permute.xlu0 %405
      %407 = vrot.lane.b32.xlu0 %v358, 64
      %v408 = vpop.permute.xlu0 %407
      %409 = vrot.lane.b32.xlu0 %v361, 64
      %v410 = vpop.permute.xlu0 %409
      %411 = vrot.lane.b32.xlu0 %v364, 64
      %v412 = vpop.permute.xlu0 %411
      %vm413 = vcmask 130048
      %v414 = vsel %vm413, %v352, 0
      %v416 = vsel %vm413, %v355, 0
      %v418 = vsel %vm413, %v358, 0
      %v420 = vsel %vm413, %v361, 0
      %v422 = vsel %vm413, %v364, 0
      %v424 = vsel %vm413, %v404, 0
      %v426 = vsel %vm413, %v406, 0
      %v428 = vsel %vm413, %v408, 0
      %v430 = vsel %vm413, %v410, 0
      %v432 = vsel %vm413, %v412, 0
      %434 = vmatpush.xpose.msra.mxu0 0.0
      %435 = vmatpush.xpose.msra.mxu0 0.0
      %436 = vmatpush.xpose.msra.mxu0 0.0
      %437 = vmatpush.xpose.msra.mxu0 0.0
      %438 = vmatpush.xpose.msra.mxu0 0.0
      %439 = vmatpush.xpose.msra.mxu0 0.0
      %440 = vmatpush.xpose.msra.mxu0 0.0
      %441 = vmatpush.xpose.msra.mxu0 0.0
      %442 = vmatpush.xpose.msra.mxu0 0.0
      %443 = vmatpush.xpose.msra.mxu0 0.0
      %444 = vmatpush.xpose.msra.mxu0 0.0
      %445 = vmatpush.xpose.msra.mxu0 %v432
      %446 = vmatpush.xpose.msra.mxu0 %v430
      %447 = vmatpush.xpose.msra.mxu0 %v428
      %448 = vmatpush.xpose.msra.mxu0 %v426
      %449 = vmatpush.xpose.msra.mxu0 %v424
      %450 = vmatmul.f32.gmra.mxu0 %v414
      %v451 = vpop.f32.mrf.mxu0
      %v452 = vadd.f32 %v137, %v451
      %453 = vmatmul.f32.gmra.mxu0 %v416
      %v454 = vpop.f32.mrf.mxu0
      %v455 = vadd.f32 %v138, %v454
      %456 = vmatmul.f32.gmra.mxu0 %v418
      %v457 = vpop.f32.mrf.mxu0
      %v458 = vadd.f32 %v139, %v457
      %459 = vmatmul.f32.gmra.mxu0 %v420
      %v460 = vpop.f32.mrf.mxu0
      %v461 = vadd.f32 %v140, %v460
      %462 = vmatmul.f32.gmra.mxu0 %v422
      %v463 = vpop.f32.mrf.mxu0
      %v464 = vadd.f32 %v141, %v463
      %465 = vdwg.mxu0
      %vm466 = vcmask 277504
      %v467 = vsel %vm466, %v452, -inf
      %468 = vmax.xlane.f32.xlu0 %v467
      %v469 = vpop.xlane.xlu0 %468
      %v470 = vsel %vm466, %v455, -inf
      %471 = vmax.xlane.f32.xlu0 %v470
      %v472 = vpop.xlane.xlu0 %471
      %v473 = vsel %vm466, %v458, -inf
      %474 = vmax.xlane.f32.xlu0 %v473
      %v475 = vpop.xlane.xlu0 %474
      %v476 = vsel %vm466, %v461, -inf
      %477 = vmax.xlane.f32.xlu0 %v476
      %v478 = vpop.xlane.xlu0 %477
      %vm479 = vcmask 271360
      %v480 = vsel %vm479, %v464, -inf
      %481 = vmax.xlane.f32.xlu0 %v480
      %v482 = vpop.xlane.xlu0 %481
      %v483 = vsub.f32 %v452, %v469
      %v484 = vsub.f32 %v455, %v472
      %v485 = vsub.f32 %v458, %v475
      %v486 = vsub.f32 %v461, %v478
      %v487 = vsub.f32 %v464, %v482
      %v488 = vmul.f32 %v483, 1.442695
      %v489 = vpow.pop %v488
      %v490 = vmul.f32 %v484, 1.442695
      %v491 = vpow.pop %v490
      %v492 = vmul.f32 %v485, 1.442695
      %v493 = vpow.pop %v492
      %v494 = vmul.f32 %v486, 1.442695
      %v495 = vpow.pop %v494
      %v496 = vmul.f32 %v487, 1.442695
      %v497 = vpow.pop %v496
      %v498 = vsel %vm466, %v489, 0.0
      %499 = vadd.xlane.f32.xlu0 %v498
      %v500 = vpop.xlane.xlu0 %499
      %v501 = vsel %vm466, %v491, 0.0
      %502 = vadd.xlane.f32.xlu0 %v501
      %v503 = vpop.xlane.xlu0 %502
      %v504 = vsel %vm466, %v493, 0.0
      %505 = vadd.xlane.f32.xlu0 %v504
      %v506 = vpop.xlane.xlu0 %505
      %v507 = vsel %vm466, %v495, 0.0
      %508 = vadd.xlane.f32.xlu0 %v507
      %v509 = vpop.xlane.xlu0 %508
      %v510 = vsel %vm479, %v497, 0.0
      %511 = vadd.xlane.f32.xlu0 %v510
      %v512 = vpop.xlane.xlu0 %511
      %v513 = vrcp.pop %v500
      %v514 = vrcp.pop %v503
      %v515 = vrcp.pop %v506
      %v516 = vrcp.pop %v509
      %v517 = vrcp.pop %v512
      %v518 = vmul.f32 %v489, %v513
      %v519 = vmul.f32 %v491, %v514
      %v520 = vmul.f32 %v493, %v515
      %v521 = vmul.f32 %v495, %v516
      %v522 = vmul.f32 %v497, %v517
      %v524 = vsel %vm466, %v518, 0
      %v527 = vsel %vm466, %v519, 0
      %v530 = vsel %vm466, %v520, 0
      %v533 = vsel %vm466, %v521, 0
      %v536 = vsel %vm466, %v522, 0
      %vm538 = vcmask 1041408
      %v540 = vsel %vm538, %v396, 0
      %542 = vmatpush.msra.mxu0 0.0
      %543 = vmatpush.msra.mxu0 0.0
      %544 = vmatpush.msra.mxu0 0.0
      %545 = vmatpush.msra.mxu0 0.0
      %546 = vmatpush.msra.mxu0 0.0
      %547 = vmatpush.msra.mxu0 0.0
      %548 = vmatpush.msra.mxu0 0.0
      %549 = vmatpush.msra.mxu0 0.0
      %550 = vmatpush.msra.mxu0 0.0
      %551 = vmatpush.msra.mxu0 0.0
      %552 = vmatpush.msra.mxu0 0.0
      %553 = vmatpush.msra.mxu0 %v540
      %554 = vmatpush.msra.mxu0 %v393
      %555 = vmatpush.msra.mxu0 %v390
      %556 = vmatpush.msra.mxu0 %v387
      %557 = vmatpush.msra.mxu0 %v384
      %558 = vmatmul.f32.gmra.mxu0 %v524
      %v559 = vpop.f32.mrf.mxu0
      %v560 = vadd.f32 0.0, %v559
      %561 = vmatmul.f32.gmra.mxu0 %v527
      %v562 = vpop.f32.mrf.mxu0
      %v563 = vadd.f32 0.0, %v562
      %564 = vmatmul.f32.gmra.mxu0 %v530
      %v565 = vpop.f32.mrf.mxu0
      %v566 = vadd.f32 0.0, %v565
      %567 = vmatmul.f32.gmra.mxu0 %v533
      %v568 = vpop.f32.mrf.mxu0
      %v569 = vadd.f32 0.0, %v568
      %570 = vmatmul.f32.gmra.mxu0 %v536
      %v571 = vpop.f32.mrf.mxu0
      %v572 = vadd.f32 0.0, %v571
      %573 = vdwg.mxu0
      %574 = vrot.lane.b32.xlu0 %v352, 112
      %v575 = vpop.permute.xlu0 %574
      %576 = vrot.lane.b32.xlu0 %v355, 112
      %v577 = vpop.permute.xlu0 %576
      %578 = vrot.lane.b32.xlu0 %v358, 112
      %v579 = vpop.permute.xlu0 %578
      %580 = vrot.lane.b32.xlu0 %v361, 112
      %v581 = vpop.permute.xlu0 %580
      %582 = vrot.lane.b32.xlu0 %v364, 112
      %v583 = vpop.permute.xlu0 %582
      %584 = vrot.lane.b32.xlu0 %v352, 48
      %v585 = vpop.permute.xlu0 %584
      %586 = vrot.lane.b32.xlu0 %v355, 48
      %v587 = vpop.permute.xlu0 %586
      %588 = vrot.lane.b32.xlu0 %v358, 48
      %v589 = vpop.permute.xlu0 %588
      %590 = vrot.lane.b32.xlu0 %v361, 48
      %v591 = vpop.permute.xlu0 %590
      %592 = vrot.lane.b32.xlu0 %v364, 48
      %v593 = vpop.permute.xlu0 %592
      %v594 = vsel %vm413, %v575, 0
      %v596 = vsel %vm413, %v577, 0
      %v598 = vsel %vm413, %v579, 0
      %v600 = vsel %vm413, %v581, 0
      %v602 = vsel %vm413, %v583, 0
      %v604 = vsel %vm413, %v585, 0
      %v606 = vsel %vm413, %v587, 0
      %v608 = vsel %vm413, %v589, 0
      %v610 = vsel %vm413, %v591, 0
      %v612 = vsel %vm413, %v593, 0
      %614 = vmatpush.xpose.msra.mxu0 0.0
      %615 = vmatpush.xpose.msra.mxu0 0.0
      %616 = vmatpush.xpose.msra.mxu0 0.0
      %617 = vmatpush.xpose.msra.mxu0 0.0
      %618 = vmatpush.xpose.msra.mxu0 0.0
      %619 = vmatpush.xpose.msra.mxu0 0.0
      %620 = vmatpush.xpose.msra.mxu0 0.0
      %621 = vmatpush.xpose.msra.mxu0 0.0
      %622 = vmatpush.xpose.msra.mxu0 0.0
      %623 = vmatpush.xpose.msra.mxu0 0.0
      %624 = vmatpush.xpose.msra.mxu0 0.0
      %625 = vmatpush.xpose.msra.mxu0 %v612
      %626 = vmatpush.xpose.msra.mxu0 %v610
      %627 = vmatpush.xpose.msra.mxu0 %v608
      %628 = vmatpush.xpose.msra.mxu0 %v606
      %629 = vmatpush.xpose.msra.mxu0 %v604
      %630 = vmatmul.f32.gmra.mxu0 %v594
      %v631 = vpop.f32.mrf.mxu0
      %v632 = vadd.f32 %v137, %v631
      %633 = vmatmul.f32.gmra.mxu0 %v596
      %v634 = vpop.f32.mrf.mxu0
      %v635 = vadd.f32 %v138, %v634
      %636 = vmatmul.f32.gmra.mxu0 %v598
      %v637 = vpop.f32.mrf.mxu0
      %v638 = vadd.f32 %v139, %v637
      %639 = vmatmul.f32.gmra.mxu0 %v600
      %v640 = vpop.f32.mrf.mxu0
      %v641 = vadd.f32 %v140, %v640
      %642 = vmatmul.f32.gmra.mxu0 %v602
      %v643 = vpop.f32.mrf.mxu0
      %v644 = vadd.f32 %v141, %v643
      %645 = vdwg.mxu0
      %v646 = vsel %vm466, %v632, -inf
      %647 = vmax.xlane.f32.xlu0 %v646
      %v648 = vpop.xlane.xlu0 %647
      %v649 = vsel %vm466, %v635, -inf
      %650 = vmax.xlane.f32.xlu0 %v649
      %v651 = vpop.xlane.xlu0 %650
      %v652 = vsel %vm466, %v638, -inf
      %653 = vmax.xlane.f32.xlu0 %v652
      %v654 = vpop.xlane.xlu0 %653
      %v655 = vsel %vm466, %v641, -inf
      %656 = vmax.xlane.f32.xlu0 %v655
      %v657 = vpop.xlane.xlu0 %656
      %v658 = vsel %vm479, %v644, -inf
      %659 = vmax.xlane.f32.xlu0 %v658
      %v660 = vpop.xlane.xlu0 %659
      %v661 = vsub.f32 %v632, %v648
      %v662 = vsub.f32 %v635, %v651
      %v663 = vsub.f32 %v638, %v654
      %v664 = vsub.f32 %v641, %v657
      %v665 = vsub.f32 %v644, %v660
      %v666 = vmul.f32 %v661, 1.442695
      %v667 = vpow.pop %v666
      %v668 = vmul.f32 %v662, 1.442695
      %v669 = vpow.pop %v668
      %v670 = vmul.f32 %v663, 1.442695
      %v671 = vpow.pop %v670
      %v672 = vmul.f32 %v664, 1.442695
      %v673 = vpow.pop %v672
      %v674 = vmul.f32 %v665, 1.442695
      %v675 = vpow.pop %v674
      %v676 = vsel %vm466, %v667, 0.0
      %677 = vadd.xlane.f32.xlu0 %v676
      %v678 = vpop.xlane.xlu0 %677
      %v679 = vsel %vm466, %v669, 0.0
      %680 = vadd.xlane.f32.xlu0 %v679
      %v681 = vpop.xlane.xlu0 %680
      %v682 = vsel %vm466, %v671, 0.0
      %683 = vadd.xlane.f32.xlu0 %v682
      %v684 = vpop.xlane.xlu0 %683
      %v685 = vsel %vm466, %v673, 0.0
      %686 = vadd.xlane.f32.xlu0 %v685
      %v687 = vpop.xlane.xlu0 %686
      %v688 = vsel %vm479, %v675, 0.0
      %689 = vadd.xlane.f32.xlu0 %v688
      %v690 = vpop.xlane.xlu0 %689
      %v691 = vrcp.pop %v678
      %v692 = vrcp.pop %v681
      %v693 = vrcp.pop %v684
      %v694 = vrcp.pop %v687
      %v695 = vrcp.pop %v690
      %v696 = vmul.f32 %v667, %v691
      %v697 = vmul.f32 %v669, %v692
      %v698 = vmul.f32 %v671, %v693
      %v699 = vmul.f32 %v673, %v694
      %v700 = vmul.f32 %v675, %v695
      %705 = vrot.lane.b32.xlu0 %v384, 112
      %v706 = vpop.permute.xlu0 %705
      %707 = vrot.lane.b32.xlu0 %v387, 112
      %v708 = vpop.permute.xlu0 %707
      %709 = vrot.lane.b32.xlu0 %v390, 112
      %v710 = vpop.permute.xlu0 %709
      %711 = vrot.lane.b32.xlu0 %v393, 112
      %v712 = vpop.permute.xlu0 %711
      %713 = vrot.lane.b32.xlu0 %v396, 112
      %v714 = vpop.permute.xlu0 %713
      %v720 = vsel %vm466, %v696, 0
      %v723 = vsel %vm466, %v697, 0
      %v726 = vsel %vm466, %v698, 0
      %v729 = vsel %vm466, %v699, 0
      %v732 = vsel %vm466, %v700, 0
      %v734 = vsel %vm538, %v714, 0
      %736 = vmatpush.msra.mxu0 0.0
      %737 = vmatpush.msra.mxu0 0.0
      %738 = vmatpush.msra.mxu0 0.0
      %739 = vmatpush.msra.mxu0 0.0
      %740 = vmatpush.msra.mxu0 0.0
      %741 = vmatpush.msra.mxu0 0.0
      %742 = vmatpush.msra.mxu0 0.0
      %743 = vmatpush.msra.mxu0 0.0
      %744 = vmatpush.msra.mxu0 0.0
      %745 = vmatpush.msra.mxu0 0.0
      %746 = vmatpush.msra.mxu0 0.0
      %747 = vmatpush.msra.mxu0 %v734
      %748 = vmatpush.msra.mxu0 %v712
      %749 = vmatpush.msra.mxu0 %v710
      %750 = vmatpush.msra.mxu0 %v708
      %751 = vmatpush.msra.mxu0 %v706
      %752 = vmatmul.f32.gmra.mxu0 %v720
      %v753 = vpop.f32.mrf.mxu0
      %v754 = vadd.f32 0.0, %v753
      %755 = vmatmul.f32.gmra.mxu0 %v723
      %v756 = vpop.f32.mrf.mxu0
      %v757 = vadd.f32 0.0, %v756
      %758 = vmatmul.f32.gmra.mxu0 %v726
      %v759 = vpop.f32.mrf.mxu0
      %v760 = vadd.f32 0.0, %v759
      %761 = vmatmul.f32.gmra.mxu0 %v729
      %v762 = vpop.f32.mrf.mxu0
      %v763 = vadd.f32 0.0, %v762
      %764 = vmatmul.f32.gmra.mxu0 %v732
      %v765 = vpop.f32.mrf.mxu0
      %v766 = vadd.f32 0.0, %v765
      %767 = vdwg.mxu0
      %768 = vrot.lane.b32.xlu0 %v352, 96
      %v769 = vpop.permute.xlu0 %768
      %770 = vrot.lane.b32.xlu0 %v355, 96
      %v771 = vpop.permute.xlu0 %770
      %772 = vrot.lane.b32.xlu0 %v358, 96
      %v773 = vpop.permute.xlu0 %772
      %774 = vrot.lane.b32.xlu0 %v361, 96
      %v775 = vpop.permute.xlu0 %774
      %776 = vrot.lane.b32.xlu0 %v364, 96
      %v777 = vpop.permute.xlu0 %776
      %778 = vrot.lane.b32.xlu0 %v352, 32
      %v779 = vpop.permute.xlu0 %778
      %780 = vrot.lane.b32.xlu0 %v355, 32
      %v781 = vpop.permute.xlu0 %780
      %782 = vrot.lane.b32.xlu0 %v358, 32
      %v783 = vpop.permute.xlu0 %782
      %784 = vrot.lane.b32.xlu0 %v361, 32
      %v785 = vpop.permute.xlu0 %784
      %786 = vrot.lane.b32.xlu0 %v364, 32
      %v787 = vpop.permute.xlu0 %786
      %v788 = vsel %vm413, %v769, 0
      %v790 = vsel %vm413, %v771, 0
      %v792 = vsel %vm413, %v773, 0
      %v794 = vsel %vm413, %v775, 0
      %v796 = vsel %vm413, %v777, 0
      %v798 = vsel %vm413, %v779, 0
      %v800 = vsel %vm413, %v781, 0
      %v802 = vsel %vm413, %v783, 0
      %v804 = vsel %vm413, %v785, 0
      %v806 = vsel %vm413, %v787, 0
      %808 = vmatpush.xpose.msra.mxu0 0.0
      %809 = vmatpush.xpose.msra.mxu0 0.0
      %810 = vmatpush.xpose.msra.mxu0 0.0
      %811 = vmatpush.xpose.msra.mxu0 0.0
      %812 = vmatpush.xpose.msra.mxu0 0.0
      %813 = vmatpush.xpose.msra.mxu0 0.0
      %814 = vmatpush.xpose.msra.mxu0 0.0
      %815 = vmatpush.xpose.msra.mxu0 0.0
      %816 = vmatpush.xpose.msra.mxu0 0.0
      %817 = vmatpush.xpose.msra.mxu0 0.0
      %818 = vmatpush.xpose.msra.mxu0 0.0
      %819 = vmatpush.xpose.msra.mxu0 %v806
      %820 = vmatpush.xpose.msra.mxu0 %v804
      %821 = vmatpush.xpose.msra.mxu0 %v802
      %822 = vmatpush.xpose.msra.mxu0 %v800
      %823 = vmatpush.xpose.msra.mxu0 %v798
      %824 = vmatmul.f32.gmra.mxu0 %v788
      %v825 = vpop.f32.mrf.mxu0
      %v826 = vadd.f32 %v137, %v825
      %827 = vmatmul.f32.gmra.mxu0 %v790
      %v828 = vpop.f32.mrf.mxu0
      %v829 = vadd.f32 %v138, %v828
      %830 = vmatmul.f32.gmra.mxu0 %v792
      %v831 = vpop.f32.mrf.mxu0
      %v832 = vadd.f32 %v139, %v831
      %833 = vmatmul.f32.gmra.mxu0 %v794
      %v834 = vpop.f32.mrf.mxu0
      %v835 = vadd.f32 %v140, %v834
      %836 = vmatmul.f32.gmra.mxu0 %v796
      %v837 = vpop.f32.mrf.mxu0
      %v838 = vadd.f32 %v141, %v837
      %839 = vdwg.mxu0
      %v840 = vsel %vm466, %v826, -inf
      %841 = vmax.xlane.f32.xlu0 %v840
      %v842 = vpop.xlane.xlu0 %841
      %v843 = vsel %vm466, %v829, -inf
      %844 = vmax.xlane.f32.xlu0 %v843
      %v845 = vpop.xlane.xlu0 %844
      %v846 = vsel %vm466, %v832, -inf
      %847 = vmax.xlane.f32.xlu0 %v846
      %v848 = vpop.xlane.xlu0 %847
      %v849 = vsel %vm466, %v835, -inf
      %850 = vmax.xlane.f32.xlu0 %v849
      %v851 = vpop.xlane.xlu0 %850
      %v852 = vsel %vm479, %v838, -inf
      %853 = vmax.xlane.f32.xlu0 %v852
      %v854 = vpop.xlane.xlu0 %853
      %v855 = vsub.f32 %v826, %v842
      %v856 = vsub.f32 %v829, %v845
      %v857 = vsub.f32 %v832, %v848
      %v858 = vsub.f32 %v835, %v851
      %v859 = vsub.f32 %v838, %v854
      %v860 = vmul.f32 %v855, 1.442695
      %v861 = vpow.pop %v860
      %v862 = vmul.f32 %v856, 1.442695
      %v863 = vpow.pop %v862
      %v864 = vmul.f32 %v857, 1.442695
      %v865 = vpow.pop %v864
      %v866 = vmul.f32 %v858, 1.442695
      %v867 = vpow.pop %v866
      %v868 = vmul.f32 %v859, 1.442695
      %v869 = vpow.pop %v868
      %v870 = vsel %vm466, %v861, 0.0
      %871 = vadd.xlane.f32.xlu0 %v870
      %v872 = vpop.xlane.xlu0 %871
      %v873 = vsel %vm466, %v863, 0.0
      %874 = vadd.xlane.f32.xlu0 %v873
      %v875 = vpop.xlane.xlu0 %874
      %v876 = vsel %vm466, %v865, 0.0
      %877 = vadd.xlane.f32.xlu0 %v876
      %v878 = vpop.xlane.xlu0 %877
      %v879 = vsel %vm466, %v867, 0.0
      %880 = vadd.xlane.f32.xlu0 %v879
      %v881 = vpop.xlane.xlu0 %880
      %v882 = vsel %vm479, %v869, 0.0
      %883 = vadd.xlane.f32.xlu0 %v882
      %v884 = vpop.xlane.xlu0 %883
      %v885 = vrcp.pop %v872
      %v886 = vrcp.pop %v875
      %v887 = vrcp.pop %v878
      %v888 = vrcp.pop %v881
      %v889 = vrcp.pop %v884
      %v890 = vmul.f32 %v861, %v885
      %v891 = vmul.f32 %v863, %v886
      %v892 = vmul.f32 %v865, %v887
      %v893 = vmul.f32 %v867, %v888
      %v894 = vmul.f32 %v869, %v889
      %895 = vrot.lane.b32.xlu0 %v384, 96
      %v896 = vpop.permute.xlu0 %895
      %897 = vrot.lane.b32.xlu0 %v387, 96
      %v898 = vpop.permute.xlu0 %897
      %899 = vrot.lane.b32.xlu0 %v390, 96
      %v900 = vpop.permute.xlu0 %899
      %901 = vrot.lane.b32.xlu0 %v393, 96
      %v902 = vpop.permute.xlu0 %901
      %903 = vrot.lane.b32.xlu0 %v396, 96
      %v904 = vpop.permute.xlu0 %903
      %v910 = vsel %vm466, %v890, 0
      %v913 = vsel %vm466, %v891, 0
      %v916 = vsel %vm466, %v892, 0
      %v919 = vsel %vm466, %v893, 0
      %v922 = vsel %vm466, %v894, 0
      %v924 = vsel %vm538, %v904, 0
      %926 = vmatpush.msra.mxu0 0.0
      %927 = vmatpush.msra.mxu0 0.0
      %928 = vmatpush.msra.mxu0 0.0
      %929 = vmatpush.msra.mxu0 0.0
      %930 = vmatpush.msra.mxu0 0.0
      %931 = vmatpush.msra.mxu0 0.0
      %932 = vmatpush.msra.mxu0 0.0
      %933 = vmatpush.msra.mxu0 0.0
      %934 = vmatpush.msra.mxu0 0.0
      %935 = vmatpush.msra.mxu0 0.0
      %936 = vmatpush.msra.mxu0 0.0
      %937 = vmatpush.msra.mxu0 %v924
      %938 = vmatpush.msra.mxu0 %v902
      %939 = vmatpush.msra.mxu0 %v900
      %940 = vmatpush.msra.mxu0 %v898
      %941 = vmatpush.msra.mxu0 %v896
      %942 = vmatmul.f32.gmra.mxu0 %v910
      %v943 = vpop.f32.mrf.mxu0
      %v944 = vadd.f32 0.0, %v943
      %945 = vmatmul.f32.gmra.mxu0 %v913
      %v946 = vpop.f32.mrf.mxu0
      %v947 = vadd.f32 0.0, %v946
      %948 = vmatmul.f32.gmra.mxu0 %v916
      %v949 = vpop.f32.mrf.mxu0
      %v950 = vadd.f32 0.0, %v949
      %951 = vmatmul.f32.gmra.mxu0 %v919
      %v952 = vpop.f32.mrf.mxu0
      %v953 = vadd.f32 0.0, %v952
      %954 = vmatmul.f32.gmra.mxu0 %v922
      %v955 = vpop.f32.mrf.mxu0
      %v956 = vadd.f32 0.0, %v955
      %957 = vdwg.mxu0
      %958 = vrot.lane.b32.xlu0 %v352, 80
      %v959 = vpop.permute.xlu0 %958
      %960 = vrot.lane.b32.xlu0 %v355, 80
      %v961 = vpop.permute.xlu0 %960
      %962 = vrot.lane.b32.xlu0 %v358, 80
      %v963 = vpop.permute.xlu0 %962
      %964 = vrot.lane.b32.xlu0 %v361, 80
      %v965 = vpop.permute.xlu0 %964
      %966 = vrot.lane.b32.xlu0 %v364, 80
      %v967 = vpop.permute.xlu0 %966
      %968 = vrot.lane.b32.xlu0 %v352, 16
      %v969 = vpop.permute.xlu0 %968
      %970 = vrot.lane.b32.xlu0 %v355, 16
      %v971 = vpop.permute.xlu0 %970
      %972 = vrot.lane.b32.xlu0 %v358, 16
      %v973 = vpop.permute.xlu0 %972
      %974 = vrot.lane.b32.xlu0 %v361, 16
      %v975 = vpop.permute.xlu0 %974
      %976 = vrot.lane.b32.xlu0 %v364, 16
      %v977 = vpop.permute.xlu0 %976
      %v978 = vsel %vm413, %v959, 0
      %v980 = vsel %vm413, %v961, 0
      %v982 = vsel %vm413, %v963, 0
      %v984 = vsel %vm413, %v965, 0
      %v986 = vsel %vm413, %v967, 0
      %v988 = vsel %vm413, %v969, 0
      %v990 = vsel %vm413, %v971, 0
      %v992 = vsel %vm413, %v973, 0
      %v994 = vsel %vm413, %v975, 0
      %v996 = vsel %vm413, %v977, 0
      %998 = vmatpush.xpose.msra.mxu0 0.0
      %999 = vmatpush.xpose.msra.mxu0 0.0
      %1000 = vmatpush.xpose.msra.mxu0 0.0
      %1001 = vmatpush.xpose.msra.mxu0 0.0
      %1002 = vmatpush.xpose.msra.mxu0 0.0
      %1003 = vmatpush.xpose.msra.mxu0 0.0
      %1004 = vmatpush.xpose.msra.mxu0 0.0
      %1005 = vmatpush.xpose.msra.mxu0 0.0
      %1006 = vmatpush.xpose.msra.mxu0 0.0
      %1007 = vmatpush.xpose.msra.mxu0 0.0
      %1008 = vmatpush.xpose.msra.mxu0 0.0
      %1009 = vmatpush.xpose.msra.mxu0 %v996
      %1010 = vmatpush.xpose.msra.mxu0 %v994
      %1011 = vmatpush.xpose.msra.mxu0 %v992
      %1012 = vmatpush.xpose.msra.mxu0 %v990
      %1013 = vmatpush.xpose.msra.mxu0 %v988
      %1014 = vmatmul.f32.gmra.mxu0 %v978
      %v1015 = vpop.f32.mrf.mxu0
      %v1016 = vadd.f32 %v137, %v1015
      %1017 = vmatmul.f32.gmra.mxu0 %v980
      %v1018 = vpop.f32.mrf.mxu0
      %v1019 = vadd.f32 %v138, %v1018
      %1020 = vmatmul.f32.gmra.mxu0 %v982
      %v1021 = vpop.f32.mrf.mxu0
      %v1022 = vadd.f32 %v139, %v1021
      %1023 = vmatmul.f32.gmra.mxu0 %v984
      %v1024 = vpop.f32.mrf.mxu0
      %v1025 = vadd.f32 %v140, %v1024
      %1026 = vmatmul.f32.gmra.mxu0 %v986
      %v1027 = vpop.f32.mrf.mxu0
      %v1028 = vadd.f32 %v141, %v1027
      %1029 = vdwg.mxu0
      %v1030 = vsel %vm466, %v1016, -inf
      %1031 = vmax.xlane.f32.xlu0 %v1030
      %v1032 = vpop.xlane.xlu0 %1031
      %v1033 = vsel %vm466, %v1019, -inf
      %1034 = vmax.xlane.f32.xlu0 %v1033
      %v1035 = vpop.xlane.xlu0 %1034
      %v1036 = vsel %vm466, %v1022, -inf
      %1037 = vmax.xlane.f32.xlu0 %v1036
      %v1038 = vpop.xlane.xlu0 %1037
      %v1039 = vsel %vm466, %v1025, -inf
      %1040 = vmax.xlane.f32.xlu0 %v1039
      %v1041 = vpop.xlane.xlu0 %1040
      %v1042 = vsel %vm479, %v1028, -inf
      %1043 = vmax.xlane.f32.xlu0 %v1042
      %v1044 = vpop.xlane.xlu0 %1043
      %v1045 = vsub.f32 %v1016, %v1032
      %v1046 = vsub.f32 %v1019, %v1035
      %v1047 = vsub.f32 %v1022, %v1038
      %v1048 = vsub.f32 %v1025, %v1041
      %v1049 = vsub.f32 %v1028, %v1044
      %v1050 = vmul.f32 %v1045, 1.442695
      %v1051 = vpow.pop %v1050
      %v1052 = vmul.f32 %v1046, 1.442695
      %v1053 = vpow.pop %v1052
      %v1054 = vmul.f32 %v1047, 1.442695
      %v1055 = vpow.pop %v1054
      %v1056 = vmul.f32 %v1048, 1.442695
      %v1057 = vpow.pop %v1056
      %v1058 = vmul.f32 %v1049, 1.442695
      %v1059 = vpow.pop %v1058
      %v1060 = vsel %vm466, %v1051, 0.0
      %1061 = vadd.xlane.f32.xlu0 %v1060
      %v1062 = vpop.xlane.xlu0 %1061
      %v1063 = vsel %vm466, %v1053, 0.0
      %1064 = vadd.xlane.f32.xlu0 %v1063
      %v1065 = vpop.xlane.xlu0 %1064
      %v1066 = vsel %vm466, %v1055, 0.0
      %1067 = vadd.xlane.f32.xlu0 %v1066
      %v1068 = vpop.xlane.xlu0 %1067
      %v1069 = vsel %vm466, %v1057, 0.0
      %1070 = vadd.xlane.f32.xlu0 %v1069
      %v1071 = vpop.xlane.xlu0 %1070
      %v1072 = vsel %vm479, %v1059, 0.0
      %1073 = vadd.xlane.f32.xlu0 %v1072
      %v1074 = vpop.xlane.xlu0 %1073
      %v1075 = vrcp.pop %v1062
      %v1076 = vrcp.pop %v1065
      %v1077 = vrcp.pop %v1068
      %v1078 = vrcp.pop %v1071
      %v1079 = vrcp.pop %v1074
      %v1080 = vmul.f32 %v1051, %v1075
      %v1081 = vmul.f32 %v1053, %v1076
      %v1082 = vmul.f32 %v1055, %v1077
      %v1083 = vmul.f32 %v1057, %v1078
      %v1084 = vmul.f32 %v1059, %v1079
      %1085 = vrot.lane.b32.xlu0 %v384, 80
      %v1086 = vpop.permute.xlu0 %1085
      %1087 = vrot.lane.b32.xlu0 %v387, 80
      %v1088 = vpop.permute.xlu0 %1087
      %1089 = vrot.lane.b32.xlu0 %v390, 80
      %v1090 = vpop.permute.xlu0 %1089
      %1091 = vrot.lane.b32.xlu0 %v393, 80
      %v1092 = vpop.permute.xlu0 %1091
      %1093 = vrot.lane.b32.xlu0 %v396, 80
      %v1094 = vpop.permute.xlu0 %1093
      %v1100 = vsel %vm466, %v1080, 0
      %v1103 = vsel %vm466, %v1081, 0
      %v1106 = vsel %vm466, %v1082, 0
      %v1109 = vsel %vm466, %v1083, 0
      %v1112 = vsel %vm466, %v1084, 0
      %v1114 = vsel %vm538, %v1094, 0
      %1116 = vmatpush.msra.mxu0 0.0
      %1117 = vmatpush.msra.mxu0 0.0
      %1118 = vmatpush.msra.mxu0 0.0
      %1119 = vmatpush.msra.mxu0 0.0
      %1120 = vmatpush.msra.mxu0 0.0
      %1121 = vmatpush.msra.mxu0 0.0
      %1122 = vmatpush.msra.mxu0 0.0
      %1123 = vmatpush.msra.mxu0 0.0
      %1124 = vmatpush.msra.mxu0 0.0
      %1125 = vmatpush.msra.mxu0 0.0
      %1126 = vmatpush.msra.mxu0 0.0
      %1127 = vmatpush.msra.mxu0 %v1114
      %1128 = vmatpush.msra.mxu0 %v1092
      %1129 = vmatpush.msra.mxu0 %v1090
      %1130 = vmatpush.msra.mxu0 %v1088
      %1131 = vmatpush.msra.mxu0 %v1086
      %1132 = vmatmul.f32.gmra.mxu0 %v1100
      %v1133 = vpop.f32.mrf.mxu0
      %v1134 = vadd.f32 0.0, %v1133
      %1135 = vmatmul.f32.gmra.mxu0 %v1103
      %v1136 = vpop.f32.mrf.mxu0
      %v1137 = vadd.f32 0.0, %v1136
      %1138 = vmatmul.f32.gmra.mxu0 %v1106
      %v1139 = vpop.f32.mrf.mxu0
      %v1140 = vadd.f32 0.0, %v1139
      %1141 = vmatmul.f32.gmra.mxu0 %v1109
      %v1142 = vpop.f32.mrf.mxu0
      %v1143 = vadd.f32 0.0, %v1142
      %1144 = vmatmul.f32.gmra.mxu0 %v1112
      %v1145 = vpop.f32.mrf.mxu0
      %v1146 = vadd.f32 0.0, %v1145
      %1147 = vdwg.mxu0
      %1153 = vrot.lane.b32.xlu0 %v754, 16
      %v1154 = vpop.permute.xlu0 %1153
      %1155 = vrot.lane.b32.xlu0 %v757, 16
      %v1156 = vpop.permute.xlu0 %1155
      %1157 = vrot.lane.b32.xlu0 %v760, 16
      %v1158 = vpop.permute.xlu0 %1157
      %1159 = vrot.lane.b32.xlu0 %v763, 16
      %v1160 = vpop.permute.xlu0 %1159
      %1161 = vrot.lane.b32.xlu0 %v766, 16
      %v1162 = vpop.permute.xlu0 %1161
      %1173 = vrot.lane.b32.xlu0 %v944, 32
      %v1174 = vpop.permute.xlu0 %1173
      %1175 = vrot.lane.b32.xlu0 %v947, 32
      %v1176 = vpop.permute.xlu0 %1175
      %1177 = vrot.lane.b32.xlu0 %v950, 32
      %v1178 = vpop.permute.xlu0 %1177
      %1179 = vrot.lane.b32.xlu0 %v953, 32
      %v1180 = vpop.permute.xlu0 %1179
      %1181 = vrot.lane.b32.xlu0 %v956, 32
      %v1182 = vpop.permute.xlu0 %1181
      %1193 = vrot.lane.b32.xlu0 %v1134, 48
      %v1194 = vpop.permute.xlu0 %1193
      %1195 = vrot.lane.b32.xlu0 %v1137, 48
      %v1196 = vpop.permute.xlu0 %1195
      %1197 = vrot.lane.b32.xlu0 %v1140, 48
      %v1198 = vpop.permute.xlu0 %1197
      %1199 = vrot.lane.b32.xlu0 %v1143, 48
      %v1200 = vpop.permute.xlu0 %1199
      %1201 = vrot.lane.b32.xlu0 %v1146, 48
      %v1202 = vpop.permute.xlu0 %1201
      %v1208 = vsel %vm413, %v560, %v1154
      %v1209 = vsel %vm413, %v563, %v1156
      %v1210 = vsel %vm413, %v566, %v1158
      %v1211 = vsel %vm413, %v569, %v1160
      %v1212 = vsel %vm413, %v572, %v1162
      %vm1213 = vcmask 261120
      %v1214 = vsel %vm1213, %v1208, %v1174
      %v1215 = vsel %vm1213, %v1209, %v1176
      %v1216 = vsel %vm1213, %v1210, %v1178
      %v1217 = vsel %vm1213, %v1211, %v1180
      %v1218 = vsel %vm1213, %v1212, %v1182
      %v1219 = vsel %vm86, %v1214, %v1194
      %v1220 = vsel %vm86, %v1215, %v1196
      %v1221 = vsel %vm86, %v1216, %v1198
      %v1222 = vsel %vm86, %v1217, %v1200
      %v1223 = vsel %vm86, %v1218, %v1202
      %s1224 = smul.u32 %s143, 64
      %s1225 = scalar_lea.vmem %s10, %s1224
      %v1226 = vld [vmem:[%s1225] sm:$0xff]
      %v1227 = vld [vmem:[%s1225 + $0x8] sm:$0xff]
      %v1228 = vld [vmem:[%s1225 + $0x10] sm:$0xff]
      %v1229 = vld [vmem:[%s1225 + $0x18] sm:$0xff]
      %v1230 = vld [vmem:[%s1225 + $0x20] sm:$0xff]
      %v1231 = vld [vmem:[%s1225 + $0x28] sm:$0xff]
      %v1232 = vld [vmem:[%s1225 + $0x30] sm:$0xff]
      %v1233 = vld [vmem:[%s1225 + $0x38] sm:$0xff]
      %v1235 = vsel %vm157, %v1219, 0
      %v1238 = vsel %vm157, %v1220, 0
      %v1241 = vsel %vm157, %v1221, 0
      %v1244 = vsel %vm157, %v1222, 0
      %v1247 = vsel %vm157, %v1223, 0
      %1249 = vmatpush.msra.mxu0 0.0
      %1250 = vmatpush.msra.mxu0 0.0
      %1251 = vmatpush.msra.mxu0 0.0
      %1252 = vmatpush.msra.mxu0 0.0
      %1253 = vmatpush.msra.mxu0 0.0
      %1254 = vmatpush.msra.mxu0 0.0
      %1255 = vmatpush.msra.mxu0 0.0
      %1256 = vmatpush.msra.mxu0 0.0
      %1257 = vmatpush.msra.mxu0 %v1233
      %1258 = vmatpush.msra.mxu0 %v1232
      %1259 = vmatpush.msra.mxu0 %v1231
      %1260 = vmatpush.msra.mxu0 %v1230
      %1261 = vmatpush.msra.mxu0 %v1229
      %1262 = vmatpush.msra.mxu0 %v1228
      %1263 = vmatpush.msra.mxu0 %v1227
      %1264 = vmatpush.msra.mxu0 %v1226
      %1265 = vmatmul.f32.gmra.mxu0 %v1235
      %v1266 = vpop.f32.mrf.mxu0
      %v1267 = vadd.f32 0.0, %v1266
      %1268 = vmatmul.f32.gmra.mxu0 %v1238
      %v1269 = vpop.f32.mrf.mxu0
      %v1270 = vadd.f32 0.0, %v1269
      %1271 = vmatmul.f32.gmra.mxu0 %v1241
      %v1272 = vpop.f32.mrf.mxu0
      %v1273 = vadd.f32 0.0, %v1272
      %1274 = vmatmul.f32.gmra.mxu0 %v1244
      %v1275 = vpop.f32.mrf.mxu0
      %v1276 = vadd.f32 0.0, %v1275
      %1277 = vmatmul.f32.gmra.mxu0 %v1247
      %v1278 = vpop.f32.mrf.mxu0
      %v1279 = vadd.f32 0.0, %v1278
      %1280 = vdwg.mxu0
      %v1281 = vadd.f32 %v148, %v1267
      %v1282 = vadd.f32 %v149, %v1270
      %v1283 = vadd.f32 %v150, %v1273
      %v1284 = vadd.f32 %v151, %v1276
      %v1285 = vadd.f32 %v152, %v1279
      %s1286 = scalar_lea.vmem %s11, %s143
      %v1287 = vld [vmem:[%s1286] sm:$0x1]
      %v1289 = vperm.slane %v1287, 0
      %v1291 = vadd.f32 %v1281, %v1289
      %v1292 = vadd.f32 %v1282, %v1289
      %v1293 = vadd.f32 %v1283, %v1289
      %v1294 = vadd.f32 %v1284, %v1289
      %v1295 = vadd.f32 %v1285, %v1289
      %s1296 = scalar_lea.vmem %s12, %s143
      %v1297 = vld [vmem:[%s1296] sm:$0x1]
      %s1298 = scalar_lea.vmem %s13, %s143
      %v1299 = vld [vmem:[%s1298] sm:$0x1]
      %v1300 = vsel %vm157, %v1291, 0.0
      %1301 = vadd.xlane.f32.xlu0 %v1300
      %v1302 = vpop.xlane.xlu0 %1301
      %v1303 = vsel %vm157, %v1292, 0.0
      %1304 = vadd.xlane.f32.xlu0 %v1303
      %v1305 = vpop.xlane.xlu0 %1304
      %v1306 = vsel %vm157, %v1293, 0.0
      %1307 = vadd.xlane.f32.xlu0 %v1306
      %v1308 = vpop.xlane.xlu0 %1307
      %v1309 = vsel %vm157, %v1294, 0.0
      %1310 = vadd.xlane.f32.xlu0 %v1309
      %v1311 = vpop.xlane.xlu0 %1310
      %v1312 = vsel %vm170, %v1295, 0.0
      %1313 = vadd.xlane.f32.xlu0 %v1312
      %v1314 = vpop.xlane.xlu0 %1313
      %v1315 = vmul.f32 %v1302, %v180
      %v1316 = vmul.f32 %v1305, %v180
      %v1317 = vmul.f32 %v1308, %v180
      %v1318 = vmul.f32 %v1311, %v180
      %v1319 = vmul.f32 %v1314, %v180
      %v1320 = vsub.f32 %v1291, %v1315
      %v1321 = vsub.f32 %v1292, %v1316
      %v1322 = vsub.f32 %v1293, %v1317
      %v1323 = vsub.f32 %v1294, %v1318
      %v1324 = vsub.f32 %v1295, %v1319
      %v1325 = vmul.f32 %v1320, %v1320
      %v1326 = vmul.f32 %v1321, %v1321
      %v1327 = vmul.f32 %v1322, %v1322
      %v1328 = vmul.f32 %v1323, %v1323
      %v1329 = vmul.f32 %v1324, %v1324
      %v1330 = vsel %vm157, %v1325, 0.0
      %1331 = vadd.xlane.f32.xlu0 %v1330
      %v1332 = vpop.xlane.xlu0 %1331
      %v1333 = vsel %vm157, %v1326, 0.0
      %1334 = vadd.xlane.f32.xlu0 %v1333
      %v1335 = vpop.xlane.xlu0 %1334
      %v1336 = vsel %vm157, %v1327, 0.0
      %1337 = vadd.xlane.f32.xlu0 %v1336
      %v1338 = vpop.xlane.xlu0 %1337
      %v1339 = vsel %vm157, %v1328, 0.0
      %1340 = vadd.xlane.f32.xlu0 %v1339
      %v1341 = vpop.xlane.xlu0 %1340
      %v1342 = vsel %vm170, %v1329, 0.0
      %1343 = vadd.xlane.f32.xlu0 %v1342
      %v1344 = vpop.xlane.xlu0 %1343
      %v1345 = vmul.f32 %v1332, %v180
      %v1346 = vmul.f32 %v1335, %v180
      %v1347 = vmul.f32 %v1338, %v180
      %v1348 = vmul.f32 %v1341, %v180
      %v1349 = vmul.f32 %v1344, %v180
      %v1350 = vadd.f32 %v1345, 1e-06
      %v1351 = vadd.f32 %v1346, 1e-06
      %v1352 = vadd.f32 %v1347, 1e-06
      %v1353 = vadd.f32 %v1348, 1e-06
      %v1354 = vadd.f32 %v1349, 1e-06
      %v1355 = vrsqrt.pop %v1350
      %v1356 = vmul.f32 %v1355, %v1350
      %v1357 = vmul.f32 %v1356, %v1355
      %v1358 = vmul.f32 0.5, %v1357
      %v1359 = vsub.f32 1.5, %v1358
      %v1360 = vmul.f32 %v1355, %v1359
      %vm1361 = vweird.f32 %v1350
      %vm1362 = vweird.f32 %v1355
      %vm1363 = vmor %vm1361, %vm1362
      %v1364 = vsel %vm1363, %v1355, %v1360
      %v1365 = vrsqrt.pop %v1351
      %v1366 = vmul.f32 %v1365, %v1351
      %v1367 = vmul.f32 %v1366, %v1365
      %v1368 = vmul.f32 0.5, %v1367
      %v1369 = vsub.f32 1.5, %v1368
      %v1370 = vmul.f32 %v1365, %v1369
      %vm1371 = vweird.f32 %v1351
      %vm1372 = vweird.f32 %v1365
      %vm1373 = vmor %vm1371, %vm1372
      %v1374 = vsel %vm1373, %v1365, %v1370
      %v1375 = vrsqrt.pop %v1352
      %v1376 = vmul.f32 %v1375, %v1352
      %v1377 = vmul.f32 %v1376, %v1375
      %v1378 = vmul.f32 0.5, %v1377
      %v1379 = vsub.f32 1.5, %v1378
      %v1380 = vmul.f32 %v1375, %v1379
      %vm1381 = vweird.f32 %v1352
      %vm1382 = vweird.f32 %v1375
      %vm1383 = vmor %vm1381, %vm1382
      %v1384 = vsel %vm1383, %v1375, %v1380
      %v1385 = vrsqrt.pop %v1353
      %v1386 = vmul.f32 %v1385, %v1353
      %v1387 = vmul.f32 %v1386, %v1385
      %v1388 = vmul.f32 0.5, %v1387
      %v1389 = vsub.f32 1.5, %v1388
      %v1390 = vmul.f32 %v1385, %v1389
      %vm1391 = vweird.f32 %v1353
      %vm1392 = vweird.f32 %v1385
      %vm1393 = vmor %vm1391, %vm1392
      %v1394 = vsel %vm1393, %v1385, %v1390
      %v1395 = vrsqrt.pop %v1354
      %v1396 = vmul.f32 %v1395, %v1354
      %v1397 = vmul.f32 %v1396, %v1395
      %v1398 = vmul.f32 0.5, %v1397
      %v1399 = vsub.f32 1.5, %v1398
      %v1400 = vmul.f32 %v1395, %v1399
      %vm1401 = vweird.f32 %v1354
      %vm1402 = vweird.f32 %v1395
      %vm1403 = vmor %vm1401, %vm1402
      %v1404 = vsel %vm1403, %v1395, %v1400
      %v1405 = vmul.f32 %v1320, %v1364
      %v1406 = vmul.f32 %v1321, %v1374
      %v1407 = vmul.f32 %v1322, %v1384
      %v1408 = vmul.f32 %v1323, %v1394
      %v1409 = vmul.f32 %v1324, %v1404
      %v1411 = vperm.slane %v1297, 0
      %v1413 = vmul.f32 %v1405, %v1411
      %v1414 = vmul.f32 %v1406, %v1411
      %v1415 = vmul.f32 %v1407, %v1411
      %v1416 = vmul.f32 %v1408, %v1411
      %v1417 = vmul.f32 %v1409, %v1411
      %v1419 = vperm.slane %v1299, 0
      %v1421 = vadd.f32 %v1413, %v1419
      %v1422 = vadd.f32 %v1414, %v1419
      %v1423 = vadd.f32 %v1415, %v1419
      %v1424 = vadd.f32 %v1416, %v1419
      %v1425 = vadd.f32 %v1417, %v1419
      %s1426 = smul.addr %s292, 8
      %s1427 = scalar_lea.vmem %s14, %s1426
      %v1428 = vld [vmem:[%s1427] sm:$0xff]
      %v1429 = vld [vmem:[%s1427 + $0x8] sm:$0xff]
      %v1430 = vld [vmem:[%s1427 + $0x10] sm:$0xff]
      %v1431 = vld [vmem:[%s1427 + $0x18] sm:$0xff]
      %v1432 = vld [vmem:[%s1427 + $0x20] sm:$0xff]
      %v1433 = vld [vmem:[%s1427 + $0x28] sm:$0xff]
      %v1434 = vld [vmem:[%s1427 + $0x30] sm:$0xff]
      %v1435 = vld [vmem:[%s1427 + $0x38] sm:$0xff]
      %v1436 = vld [vmem:[%s1427 + $0x40] sm:$0xff]
      %v1437 = vld [vmem:[%s1427 + $0x48] sm:$0xff]
      %v1438 = vld [vmem:[%s1427 + $0x50] sm:$0xff]
      %v1439 = vld [vmem:[%s1427 + $0x58] sm:$0xff]
      %v1440 = vld [vmem:[%s1427 + $0x60] sm:$0xff]
      %v1441 = vld [vmem:[%s1427 + $0x68] sm:$0xff]
      %v1442 = vld [vmem:[%s1427 + $0x70] sm:$0xff]
      %v1443 = vld [vmem:[%s1427 + $0x78] sm:$0xff]
      %s1444 = scalar_lea.vmem %s15, %s311
      %v1445 = vld [vmem:[%s1444] sm:$0x3]
      %v1447 = vperm.slane %v1445, 0
      %v1448 = vperm.slane %v1445, 1
      %v1452 = vsel %vm157, %v1421, 0
      %v1455 = vsel %vm157, %v1422, 0
      %v1458 = vsel %vm157, %v1423, 0
      %v1461 = vsel %vm157, %v1424, 0
      %v1464 = vsel %vm157, %v1425, 0
      %1466 = vmatpush.msra.mxu0 0.0
      %1467 = vmatpush.msra.mxu0 0.0
      %1468 = vmatpush.msra.mxu0 0.0
      %1469 = vmatpush.msra.mxu0 0.0
      %1470 = vmatpush.msra.mxu0 0.0
      %1471 = vmatpush.msra.mxu0 0.0
      %1472 = vmatpush.msra.mxu0 0.0
      %1473 = vmatpush.msra.mxu0 0.0
      %1474 = vmatpush.msra.mxu0 %v1442
      %1475 = vmatpush.msra.mxu0 %v1440
      %1476 = vmatpush.msra.mxu0 %v1438
      %1477 = vmatpush.msra.mxu0 %v1436
      %1478 = vmatpush.msra.mxu0 %v1434
      %1479 = vmatpush.msra.mxu0 %v1432
      %1480 = vmatpush.msra.mxu0 %v1430
      %1481 = vmatpush.msra.mxu0 %v1428
      %1482 = vmatmul.f32.gmra.mxu0 %v1452
      %v1483 = vpop.f32.mrf.mxu0
      %v1484 = vadd.f32 %v1447, %v1483
      %1485 = vmatmul.f32.gmra.mxu0 %v1455
      %v1486 = vpop.f32.mrf.mxu0
      %v1487 = vadd.f32 %v1447, %v1486
      %1488 = vmatmul.f32.gmra.mxu0 %v1458
      %v1489 = vpop.f32.mrf.mxu0
      %v1490 = vadd.f32 %v1447, %v1489
      %1491 = vmatmul.f32.gmra.mxu0 %v1461
      %v1492 = vpop.f32.mrf.mxu0
      %v1493 = vadd.f32 %v1447, %v1492
      %1494 = vmatmul.f32.gmra.mxu0 %v1464
      %v1495 = vpop.f32.mrf.mxu0
      %v1496 = vadd.f32 %v1447, %v1495
      %1497 = vdwg.mxu0
      %1498 = vmatpush.msra.mxu0 0.0
      %1499 = vmatpush.msra.mxu0 0.0
      %1500 = vmatpush.msra.mxu0 0.0
      %1501 = vmatpush.msra.mxu0 0.0
      %1502 = vmatpush.msra.mxu0 0.0
      %1503 = vmatpush.msra.mxu0 0.0
      %1504 = vmatpush.msra.mxu0 0.0
      %1505 = vmatpush.msra.mxu0 0.0
      %1506 = vmatpush.msra.mxu0 %v1443
      %1507 = vmatpush.msra.mxu0 %v1441
      %1508 = vmatpush.msra.mxu0 %v1439
      %1509 = vmatpush.msra.mxu0 %v1437
      %1510 = vmatpush.msra.mxu0 %v1435
      %1511 = vmatpush.msra.mxu0 %v1433
      %1512 = vmatpush.msra.mxu0 %v1431
      %1513 = vmatpush.msra.mxu0 %v1429
      %1514 = vmatmul.f32.gmra.mxu0 %v1452
      %v1515 = vpop.f32.mrf.mxu0
      %v1516 = vadd.f32 %v1448, %v1515
      %1517 = vmatmul.f32.gmra.mxu0 %v1455
      %v1518 = vpop.f32.mrf.mxu0
      %v1519 = vadd.f32 %v1448, %v1518
      %1520 = vmatmul.f32.gmra.mxu0 %v1458
      %v1521 = vpop.f32.mrf.mxu0
      %v1522 = vadd.f32 %v1448, %v1521
      %1523 = vmatmul.f32.gmra.mxu0 %v1461
      %v1524 = vpop.f32.mrf.mxu0
      %v1525 = vadd.f32 %v1448, %v1524
      %1526 = vmatmul.f32.gmra.mxu0 %v1464
      %v1527 = vpop.f32.mrf.mxu0
      %v1528 = vadd.f32 %v1448, %v1527
      %1529 = vdwg.mxu0
      %v1530 = vmul.f32 %v1484, %v1484
      %v1531 = vmul.f32 %v1516, %v1516
      %v1532 = vmul.f32 %v1487, %v1487
      %v1533 = vmul.f32 %v1519, %v1519
      %v1534 = vmul.f32 %v1490, %v1490
      %v1535 = vmul.f32 %v1522, %v1522
      %v1536 = vmul.f32 %v1493, %v1493
      %v1537 = vmul.f32 %v1525, %v1525
      %v1538 = vmul.f32 %v1496, %v1496
      %v1539 = vmul.f32 %v1528, %v1528
      %v1540 = vmul.f32 %v1484, %v1530
      %v1541 = vmul.f32 %v1516, %v1531
      %v1542 = vmul.f32 %v1487, %v1532
      %v1543 = vmul.f32 %v1519, %v1533
      %v1544 = vmul.f32 %v1490, %v1534
      %v1545 = vmul.f32 %v1522, %v1535
      %v1546 = vmul.f32 %v1493, %v1536
      %v1547 = vmul.f32 %v1525, %v1537
      %v1548 = vmul.f32 %v1496, %v1538
      %v1549 = vmul.f32 %v1528, %v1539
      %v1550 = vmul.f32 %v1540, 0.044715
      %v1551 = vmul.f32 %v1541, 0.044715
      %v1552 = vmul.f32 %v1542, 0.044715
      %v1553 = vmul.f32 %v1543, 0.044715
      %v1554 = vmul.f32 %v1544, 0.044715
      %v1555 = vmul.f32 %v1545, 0.044715
      %v1556 = vmul.f32 %v1546, 0.044715
      %v1557 = vmul.f32 %v1547, 0.044715
      %v1558 = vmul.f32 %v1548, 0.044715
      %v1559 = vmul.f32 %v1549, 0.044715
      %v1560 = vadd.f32 %v1484, %v1550
      %v1561 = vadd.f32 %v1516, %v1551
      %v1562 = vadd.f32 %v1487, %v1552
      %v1563 = vadd.f32 %v1519, %v1553
      %v1564 = vadd.f32 %v1490, %v1554
      %v1565 = vadd.f32 %v1522, %v1555
      %v1566 = vadd.f32 %v1493, %v1556
      %v1567 = vadd.f32 %v1525, %v1557
      %v1568 = vadd.f32 %v1496, %v1558
      %v1569 = vadd.f32 %v1528, %v1559
      %v1570 = vmul.f32 %v1560, 0.7978846
      %v1571 = vmul.f32 %v1561, 0.7978846
      %v1572 = vmul.f32 %v1562, 0.7978846
      %v1573 = vmul.f32 %v1563, 0.7978846
      %v1574 = vmul.f32 %v1564, 0.7978846
      %v1575 = vmul.f32 %v1565, 0.7978846
      %v1576 = vmul.f32 %v1566, 0.7978846
      %v1577 = vmul.f32 %v1567, 0.7978846
      %v1578 = vmul.f32 %v1568, 0.7978846
      %v1579 = vmul.f32 %v1569, 0.7978846
      %v1580 = vtanh.pop %v1570
      %v1581 = vtanh.pop %v1571
      %v1582 = vtanh.pop %v1572
      %v1583 = vtanh.pop %v1573
      %v1584 = vtanh.pop %v1574
      %v1585 = vtanh.pop %v1575
      %v1586 = vtanh.pop %v1576
      %v1587 = vtanh.pop %v1577
      %v1588 = vtanh.pop %v1578
      %v1589 = vtanh.pop %v1579
      %v1590 = vadd.f32 %v1580, 1.0
      %v1591 = vadd.f32 %v1581, 1.0
      %v1592 = vadd.f32 %v1582, 1.0
      %v1593 = vadd.f32 %v1583, 1.0
      %v1594 = vadd.f32 %v1584, 1.0
      %v1595 = vadd.f32 %v1585, 1.0
      %v1596 = vadd.f32 %v1586, 1.0
      %v1597 = vadd.f32 %v1587, 1.0
      %v1598 = vadd.f32 %v1588, 1.0
      %v1599 = vadd.f32 %v1589, 1.0
      %v1600 = vmul.f32 %v1590, 0.5
      %v1601 = vmul.f32 %v1591, 0.5
      %v1602 = vmul.f32 %v1592, 0.5
      %v1603 = vmul.f32 %v1593, 0.5
      %v1604 = vmul.f32 %v1594, 0.5
      %v1605 = vmul.f32 %v1595, 0.5
      %v1606 = vmul.f32 %v1596, 0.5
      %v1607 = vmul.f32 %v1597, 0.5
      %v1608 = vmul.f32 %v1598, 0.5
      %v1609 = vmul.f32 %v1599, 0.5
      %v1610 = vmul.f32 %v1484, %v1600
      %v1611 = vmul.f32 %v1516, %v1601
      %v1612 = vmul.f32 %v1487, %v1602
      %v1613 = vmul.f32 %v1519, %v1603
      %v1614 = vmul.f32 %v1490, %v1604
      %v1615 = vmul.f32 %v1522, %v1605
      %v1616 = vmul.f32 %v1493, %v1606
      %v1617 = vmul.f32 %v1525, %v1607
      %v1618 = vmul.f32 %v1496, %v1608
      %v1619 = vmul.f32 %v1528, %v1609
      %s1620 = smul.u32 %s143, 256
      %s1621 = scalar_lea.vmem %s16, %s1620
      %v1622 = vld [vmem:[%s1621] sm:$0xff]
      %v1623 = vld [vmem:[%s1621 + $0x8] sm:$0xff]
      %v1624 = vld [vmem:[%s1621 + $0x10] sm:$0xff]
      %v1625 = vld [vmem:[%s1621 + $0x18] sm:$0xff]
      %v1626 = vld [vmem:[%s1621 + $0x20] sm:$0xff]
      %v1627 = vld [vmem:[%s1621 + $0x28] sm:$0xff]
      %v1628 = vld [vmem:[%s1621 + $0x30] sm:$0xff]
      %v1629 = vld [vmem:[%s1621 + $0x38] sm:$0xff]
      %v1630 = vld [vmem:[%s1621 + $0x40] sm:$0xff]
      %v1631 = vld [vmem:[%s1621 + $0x48] sm:$0xff]
      %v1632 = vld [vmem:[%s1621 + $0x50] sm:$0xff]
      %v1633 = vld [vmem:[%s1621 + $0x58] sm:$0xff]
      %v1634 = vld [vmem:[%s1621 + $0x60] sm:$0xff]
      %v1635 = vld [vmem:[%s1621 + $0x68] sm:$0xff]
      %v1636 = vld [vmem:[%s1621 + $0x70] sm:$0xff]
      %v1637 = vld [vmem:[%s1621 + $0x78] sm:$0xff]
      %v1638 = vld [vmem:[%s1621 + $0x80] sm:$0xff]
      %v1639 = vld [vmem:[%s1621 + $0x88] sm:$0xff]
      %v1640 = vld [vmem:[%s1621 + $0x90] sm:$0xff]
      %v1641 = vld [vmem:[%s1621 + $0x98] sm:$0xff]
      %v1642 = vld [vmem:[%s1621 + $0xa0] sm:$0xff]
      %v1643 = vld [vmem:[%s1621 + $0xa8] sm:$0xff]
      %v1644 = vld [vmem:[%s1621 + $0xb0] sm:$0xff]
      %v1645 = vld [vmem:[%s1621 + $0xb8] sm:$0xff]
      %v1646 = vld [vmem:[%s1621 + $0xc0] sm:$0xff]
      %v1647 = vld [vmem:[%s1621 + $0xc8] sm:$0xff]
      %v1648 = vld [vmem:[%s1621 + $0xd0] sm:$0xff]
      %v1649 = vld [vmem:[%s1621 + $0xd8] sm:$0xff]
      %v1650 = vld [vmem:[%s1621 + $0xe0] sm:$0xff]
      %v1651 = vld [vmem:[%s1621 + $0xe8] sm:$0xff]
      %v1652 = vld [vmem:[%s1621 + $0xf0] sm:$0xff]
      %v1653 = vld [vmem:[%s1621 + $0xf8] sm:$0xff]
      %s1654 = scalar_lea.vmem %s17, %s143
      %v1655 = vld [vmem:[%s1654] sm:$0x1]
      %v1657 = vperm.slane %v1655, 0
      %1659 = vmatpush.msra.mxu0 %v1637
      %1660 = vmatpush.msra.mxu0 %v1636
      %1661 = vmatpush.msra.mxu0 %v1635
      %1662 = vmatpush.msra.mxu0 %v1634
      %1663 = vmatpush.msra.mxu0 %v1633
      %1664 = vmatpush.msra.mxu0 %v1632
      %1665 = vmatpush.msra.mxu0 %v1631
      %1666 = vmatpush.msra.mxu0 %v1630
      %1667 = vmatpush.msra.mxu0 %v1629
      %1668 = vmatpush.msra.mxu0 %v1628
      %1669 = vmatpush.msra.mxu0 %v1627
      %1670 = vmatpush.msra.mxu0 %v1626
      %1671 = vmatpush.msra.mxu0 %v1625
      %1672 = vmatpush.msra.mxu0 %v1624
      %1673 = vmatpush.msra.mxu0 %v1623
      %1674 = vmatpush.msra.mxu0 %v1622
      %1675 = vmatmul.f32.gmra.mxu0 %v1610
      %v1676 = vpop.f32.mrf.mxu0
      %v1677 = vadd.f32 %v1657, %v1676
      %1678 = vmatmul.f32.gmra.mxu0 %v1612
      %v1679 = vpop.f32.mrf.mxu0
      %v1680 = vadd.f32 %v1657, %v1679
      %1681 = vmatmul.f32.gmra.mxu0 %v1614
      %v1682 = vpop.f32.mrf.mxu0
      %v1683 = vadd.f32 %v1657, %v1682
      %1684 = vmatmul.f32.gmra.mxu0 %v1616
      %v1685 = vpop.f32.mrf.mxu0
      %v1686 = vadd.f32 %v1657, %v1685
      %1687 = vmatmul.f32.gmra.mxu0 %v1618
      %v1688 = vpop.f32.mrf.mxu0
      %v1689 = vadd.f32 %v1657, %v1688
      %1690 = vdwg.mxu0
      %1691 = vmatpush.msra.mxu0 %v1653
      %1692 = vmatpush.msra.mxu0 %v1652
      %1693 = vmatpush.msra.mxu0 %v1651
      %1694 = vmatpush.msra.mxu0 %v1650
      %1695 = vmatpush.msra.mxu0 %v1649
      %1696 = vmatpush.msra.mxu0 %v1648
      %1697 = vmatpush.msra.mxu0 %v1647
      %1698 = vmatpush.msra.mxu0 %v1646
      %1699 = vmatpush.msra.mxu0 %v1645
      %1700 = vmatpush.msra.mxu0 %v1644
      %1701 = vmatpush.msra.mxu0 %v1643
      %1702 = vmatpush.msra.mxu0 %v1642
      %1703 = vmatpush.msra.mxu0 %v1641
      %1704 = vmatpush.msra.mxu0 %v1640
      %1705 = vmatpush.msra.mxu0 %v1639
      %1706 = vmatpush.msra.mxu0 %v1638
      %1707 = vmatmul.f32.gmra.mxu0 %v1611
      %v1708 = vpop.f32.mrf.mxu0
      %v1709 = vadd.f32 %v1677, %v1708
      %1710 = vmatmul.f32.gmra.mxu0 %v1613
      %v1711 = vpop.f32.mrf.mxu0
      %v1712 = vadd.f32 %v1680, %v1711
      %1713 = vmatmul.f32.gmra.mxu0 %v1615
      %v1714 = vpop.f32.mrf.mxu0
      %v1715 = vadd.f32 %v1683, %v1714
      %1716 = vmatmul.f32.gmra.mxu0 %v1617
      %v1717 = vpop.f32.mrf.mxu0
      %v1718 = vadd.f32 %v1686, %v1717
      %1719 = vmatmul.f32.gmra.mxu0 %v1619
      %v1720 = vpop.f32.mrf.mxu0
      %v1721 = vadd.f32 %v1689, %v1720
      %1722 = vdwg.mxu0
      %v1723 = vadd.f32 %v1291, %v1709
      %v1724 = vadd.f32 %v1292, %v1712
      %v1725 = vadd.f32 %v1293, %v1715
      %v1726 = vadd.f32 %v1294, %v1718
      %v1727 = vadd.f32 %v1295, %v1721
    $region94: #{vit_small_forward.1} parent=1 // loop_footer
      %s147 = sadd.s32 1, %s143
    $region95: #{vit_small_forward.1} parent=1 // loop_footer_branch
      %142 = sbr.rel target = $region91
    $region96: #{vit_small_forward.1} parent=1 // loop_exit
      _
    %v1728 = vld [vmem:[%s18] sm:$0x1]
    %v1729 = vld [vmem:[%s19] sm:$0x1]
    %vm1730 = vcmask 517120
    %v1731 = vsel %vm1730, %v152, 0.0
    %1732 = vadd.xlane.f32.xlu0 %v1731
    %v1733 = vpop.xlane.xlu0 %1732
    %v1734 = vrcp.pop 64.0
    %v1735 = vmul.f32 64.0, %v1734
    %v1736 = vsub.f32 1.0, %v1735
    %v1737 = vmul.f32 %v1734, %v1736
    %v1738 = vadd.f32 %v1734, %v1737
    %vm1739 = vweird.f32 %v1734
    %v1740 = vsel %vm1739, %v1734, %v1738
    %v1741 = vmul.f32 %v1733, %v1740
    %v1742 = vsub.f32 %v152, %v1741
    %v1743 = vmul.f32 %v1742, %v1742
    %v1744 = vsel %vm1730, %v1743, 0.0
    %1745 = vadd.xlane.f32.xlu0 %v1744
    %v1746 = vpop.xlane.xlu0 %1745
    %v1747 = vmul.f32 %v1746, %v1740
    %v1748 = vadd.f32 %v1747, 1e-06
    %v1749 = vrsqrt.pop %v1748
    %v1750 = vmul.f32 %v1749, %v1748
    %v1751 = vmul.f32 %v1750, %v1749
    %v1752 = vmul.f32 0.5, %v1751
    %v1753 = vsub.f32 1.5, %v1752
    %v1754 = vmul.f32 %v1749, %v1753
    %vm1755 = vweird.f32 %v1748
    %vm1756 = vweird.f32 %v1749
    %vm1757 = vmor %vm1755, %vm1756
    %v1758 = vsel %vm1757, %v1749, %v1754
    %v1759 = vmul.f32 %v1742, %v1758
    %v1761 = vperm.slane %v1728, 0
    %v1763 = vmul.f32 %v1759, %v1761
    %v1765 = vperm.slane %v1729, 0
    %v1767 = vadd.f32 %v1763, %v1765
    %v1768 = vld [vmem:[%s20] sm:$0xff]
    %v1769 = vld [vmem:[%s20 + $0x8] sm:$0xff]
    %v1770 = vld [vmem:[%s20 + $0x10] sm:$0xff]
    %v1771 = vld [vmem:[%s20 + $0x18] sm:$0xff]
    %v1772 = vld [vmem:[%s20 + $0x20] sm:$0xff]
    %v1773 = vld [vmem:[%s20 + $0x28] sm:$0xff]
    %v1774 = vld [vmem:[%s20 + $0x30] sm:$0xff]
    %v1775 = vld [vmem:[%s20 + $0x38] sm:$0xff]
    %v1776 = vld [vmem:[%s21] sm:$0x1]
    %v1778 = vperm.slane %v1776, 0
    %vm1780 = vcmask 523264
    %v1782 = vsel %vm1780, %v1767, 0
    %1784 = vmatpush.msra.mxu0 0.0
    %1785 = vmatpush.msra.mxu0 0.0
    %1786 = vmatpush.msra.mxu0 0.0
    %1787 = vmatpush.msra.mxu0 0.0
    %1788 = vmatpush.msra.mxu0 0.0
    %1789 = vmatpush.msra.mxu0 0.0
    %1790 = vmatpush.msra.mxu0 0.0
    %1791 = vmatpush.msra.mxu0 0.0
    %1792 = vmatpush.msra.mxu0 %v1775
    %1793 = vmatpush.msra.mxu0 %v1774
    %1794 = vmatpush.msra.mxu0 %v1773
    %1795 = vmatpush.msra.mxu0 %v1772
    %1796 = vmatpush.msra.mxu0 %v1771
    %1797 = vmatpush.msra.mxu0 %v1770
    %1798 = vmatpush.msra.mxu0 %v1769
    %1799 = vmatpush.msra.mxu0 %v1768
    %1800 = vmatmul.f32.gmra.mxu0 %v1782
    %v1801 = vpop.f32.mrf.mxu0
    %v1802 = vadd.f32 %v1778, %v1801
    %1803 = vdwg.mxu0
    %1804 = vst [vmem:[#allocation2] sm:$0x3] %v1802
    // Predicated region
    $region97: #{vit_small_forward.1} parent=1 // pred_check
      _
    $region98: #{vit_small_forward.1} parent=1 // pred_check_branch
      %1806 = sbr.rel (0) target = $region100
    $region99: #{vit_small_forward.1} parent=1 // pred_region
      %1808 = vsyncadd [#allocation3], 0
      %s1810 = sshll.u32 [#allocation2], 4
      %s1811 = int_to_ptr.vmem [resolvable:$true] %s1810
      %s1812 = sshll.u32 %s22, 4
      %s1813 = int_to_ptr.hbm [resolvable:$true] %s1812
      %1815 = dma.vmem_to_hbm [thread:$0]  %s1811, 32, %s1813, [#allocation3]
    $region100: #{vit_small_forward.1} parent=1 // pred_fallthru
      _
    // Predicated region
    $region101: #{vit_small_forward.1} parent=1 // pred_check
      _
    $region102: #{vit_small_forward.1} parent=1 // pred_check_branch
      %1817 = sbr.rel (0) target = $region104
    $region103: #{vit_small_forward.1} parent=1 // pred_region
      %1819 = dma.done [#allocation3], 32
    $region104: #{vit_small_forward.1} parent=1 // pred_fallthru
      _
    %1820 = vsyncpa [#allocation3], 1

</llo_original>
